<compile_context>
chip_gen: v7x
topology: tpu7x:2x2x1
jax: 0.10.0
libtpu: 0.0.40
codegen_flags: <defaults>
</compile_context>

<pallas_src>
import functools

import jax
import jax.numpy as jnp
from jax import lax
from jax.experimental import pallas as pl
from jax.experimental.pallas import tpu as pltpu


def _rup(x, m):
    return -(-x // m) * m


def _sepconv_bn_swish_kernel(x_ref, dw_ref, pw_ref, bias_ref, o_ref, xpad_ref,
                             *, K, n_ht, use_mxu):
    """One (batch element, H-tile) per grid step.

    x_ref    : (1, C_in, H, W)       full image for this batch element (VMEM resident
                                     across the H-tiles of the same n)
    dw_ref   : (K*K, C_in, 1, 1)     depthwise taps, tap-major (minor-dims broadcast)
    pw_ref   : (C_out, C_in)         [MXU path]  BN-folded pointwise weights
               (C_in, C_out, 1, 1)   [VPU path]
    bias_ref : (C_out, 1)            [MXU path]  folded BN bias
               (C_out, 1, 1)         [VPU path]
    o_ref    : (1, C_out, TH, W)     output tile
    xpad_ref : (C_in, TH+2p, W+2p)   zero-padded input window scratch (VMEM)
    """
    p = K // 2
    C_in, THp, Wp = xpad_ref.shape
    TH = THp - 2 * p
    W = Wp - 2 * p
    C_out = o_ref.shape[1]

    ht = pl.program_id(1)

    # ---- assemble the zero-padded (C_in, TH+2p, W+2p) window in VMEM (no HBM pad) ----
    if n_ht == 1:
        xpad_ref[:, p:p + TH, p:p + W] = x_ref[0]
    else:
        r0 = ht * TH
        if TH % 8 == 0:
            r0 = pl.multiple_of(r0, 8)          # sublane-aligned dynamic row start
        xpad_ref[:, p:p + TH, p:p + W] = x_ref[0, :, pl.ds(r0, TH), :]

    if p > 0:
        # Scratch contents are undefined at entry and there is no reliable
        # "first iteration on this core" test under megacore sharding, so the (tiny)
        # border strips are re-zeroed every step instead of zero-filling the buffer.
        zcol = jnp.zeros((C_in, THp, p), dtype=xpad_ref.dtype)
        xpad_ref[:, :, 0:p] = zcol              # left zero columns (incl. corners)
        xpad_ref[:, :, p + W:Wp] = zcol         # right zero columns (incl. corners)

        zrow = jnp.zeros((C_in, p, W), dtype=xpad_ref.dtype)
        if n_ht == 1:
            xpad_ref[:, 0:p, p:p + W] = zrow
            xpad_ref[:, p + TH:THp, p:p + W] = zrow
        else:
            @pl.when(ht == 0)
            def _():                            # top image border -> zeros
                xpad_ref[:, 0:p, p:p + W] = zrow

            @pl.when(ht > 0)
            def _():                            # top halo rows come from the previous tile
                xpad_ref[:, 0:p, p:p + W] = x_ref[0, :, pl.ds(ht * TH - p, p), :]

            @pl.when(ht == n_ht - 1)
            def _():                            # bottom image border -> zeros
                xpad_ref[:, p + TH:THp, p:p + W] = zrow

            @pl.when(ht < n_ht - 1)
            def _():                            # bottom halo rows come from the next tile
                xpad_ref[:, p + TH:THp, p:p + W] = x_ref[0, :, pl.ds(ht * TH + TH, p), :]

    # ---- depthwise conv: K*K shifted-window MACs (VPU); shifts are static-offset
    #      reads from the padded scratch (load/XLU work, off the VALU) ----
    dw_all = dw_ref[...].astype(jnp.float32)    # hoisted: single load of all taps
    acc = xpad_ref[:, 0:TH, 0:W].astype(jnp.float32) * dw_all[0]
    for t in range(1, K * K):
        ki, kj = divmod(t, K)
        win = xpad_ref[:, ki:ki + TH, kj:kj + W].astype(jnp.float32)
        acc = acc + win * dw_all[t]             # (C_in,1,1) bcast over minor dims

    # ---- pointwise 1x1 conv (BN scale already folded into pw) + bias + Swish ----
    if use_mxu:
        # Realistic EfficientDet channel counts: (C_out,C_in) x (C_in,TH*W) on the MXU.
        y = jnp.dot(pw_ref[...].astype(jnp.float32), acc.reshape(C_in, TH * W),
                    preferred_element_type=jnp.float32)          # (C_out, TH*W)
        y = y + bias_ref[...]                                    # (C_out, 1) bcast
        y = y * jax.nn.sigmoid(y)                                # Swish (EUP)
        o_ref[0] = y.reshape(C_out, TH, W).astype(o_ref.dtype)
    else:
        # Tiny channel counts (this test): the MXU would run at <1% fill.  One broadcast
        # sum over C_in builds the whole (C_out, TH, W) tile in full-width VPU ops; bias,
        # sigmoid and the store happen once instead of per output channel.  Math in f32.
        pw_all = pw_ref[...].astype(jnp.float32)                 # (C_in, C_out, 1, 1)
        y = acc[0:1] * pw_all[0]                                 # (1,TH,W)*(C_out,1,1)
        for ci in range(1, C_in):
            y = y + acc[ci:ci + 1] * pw_all[ci]
        y = y + bias_ref[...]                                    # (C_out,1,1) bcast
        y = y * jax.nn.sigmoid(y)                                # Swish (EUP)
        o_ref[0] = y.astype(o_ref.dtype)


def separable_conv2d_bn_swish(x, dw_w, pw_w, gamma, beta, run_mean, run_var,
                              *, kernel_size, bn_eps, h_tile=None):
    """x: (N, C_in, H, W) NCHW, kept end-to-end (no transposes, no HBM-side pad).
    Weights follow PyTorch shapes: dw_w (C_in, 1, K, K), pw_w (C_out, C_in, 1, 1)."""
    N, C_in, H, W = x.shape
    C_out = pw_w.shape[0]
    K = kernel_size
    p = K // 2
    itemsize = jnp.dtype(x.dtype).itemsize

    def _tile_bytes(th):   # (8,128)-tiling-aware bytes of the H-tiled blocks
        return itemsize * (2 * C_out * _rup(th, 8) * _rup(W, 128)
                           + C_in * _rup(th + 2 * p, 8) * _rup(W + 2 * p, 128))

    if h_tile is None:
        # Biggest H-tile whose output block + halo scratch stay within a modest budget
        # (fewest grid steps / least per-step overhead); small feature maps run untiled.
        h_tile = H
        while h_tile % 16 == 0 and _tile_bytes(h_tile) > (8 << 20):
            h_tile //= 2
    assert H % h_tile == 0 and (h_tile % 8 == 0 or h_tile == H), "bad h_tile"
    assert h_tile >= p, "h_tile must cover the conv halo"
    n_ht = H // h_tile

    # ---- parameter folding (tiny arrays, trace-time JAX) ----
    scale = gamma * lax.rsqrt(run_var + bn_eps)                  # (C_out,)
    bias = beta - run_mean * scale                               # (C_out,)
    # depthwise taps, tap-major, pre-shaped for a minor-dims-only broadcast in-kernel
    dw = jnp.transpose(dw_w[:, 0, :, :], (1, 2, 0)).reshape(K * K, C_in, 1, 1)
    # fold the BN scale into the pointwise weights
    pw = pw_w[:, :, 0, 0] * scale[:, None]                       # (C_out, C_in)

    use_mxu = C_in * C_out > 256
    if use_mxu:
        pw_arr = pw                                              # (C_out, C_in)
        pw_spec = pl.BlockSpec((C_out, C_in), lambda n, t: (0, 0))
        bias_arr = bias.reshape(C_out, 1)
        bias_spec = pl.BlockSpec((C_out, 1), lambda n, t: (0, 0))
        pw_pad_elems = _rup(C_out, 8) * _rup(C_in, 128)
    else:
        pw_arr = jnp.transpose(pw, (1, 0)).reshape(C_in, C_out, 1, 1)
        pw_spec = pl.BlockSpec((C_in, C_out, 1, 1), lambda n, t: (0, 0, 0, 0))
        bias_arr = bias.reshape(C_out, 1, 1)
        bias_spec = pl.BlockSpec((C_out, 1, 1), lambda n, t: (0, 0, 0))
        pw_pad_elems = C_in * C_out * 8 * 128

    # VMEM budget: double-buffered input/output blocks + padded scratch + params,
    # all rounded up to the (8,128) VMEM tile.
    est = itemsize * (
        2 * C_in * _rup(H, 8) * _rup(W, 128)                      # x block (x2 buffers)
        + 2 * C_out * _rup(h_tile, 8) * _rup(W, 128)              # out block (x2 buffers)
        + C_in * _rup(h_tile + 2 * p, 8) * _rup(W + 2 * p, 128)   # padded scratch
        + 2 * K * K * C_in * 8 * 128                              # dw taps (tile-padded)
        + 2 * pw_pad_elems                                        # pointwise weights
        + 2 * _rup(C_out, 8) * 128)                               # bias
    vmem_limit = int(min(64 * 2 ** 20, max(32 * 2 ** 20, 2 * est)))

    kernel = functools.partial(_sepconv_bn_swish_kernel, K=K, n_ht=n_ht, use_mxu=use_mxu)

    return pl.pallas_call(
        kernel,
        out_shape=jax.ShapeDtypeStruct((N, C_out, H, W), x.dtype),
        grid_spec=pltpu.PrefetchScalarGridSpec(
            num_scalar_prefetch=0,
            grid=(N, n_ht),
            in_specs=[
                # full image per batch element; block index is constant along the H-tile
                # axis so it is fetched once per n and stays VMEM-resident
                pl.BlockSpec((1, C_in, H, W), lambda n, t: (n, 0, 0, 0)),
                pl.BlockSpec((K * K, C_in, 1, 1), lambda n, t: (0, 0, 0, 0)),
                pw_spec,
                bias_spec,
            ],
            out_specs=pl.BlockSpec((1, C_out, h_tile, W), lambda n, t: (n, 0, t, 0)),
            scratch_shapes=[
                pltpu.VMEM((C_in, h_tile + 2 * p, W + 2 * p), x.dtype),
            ],
        ),
        compiler_params=pltpu.CompilerParams(
            dimension_semantics=("parallel", "parallel"),
            vmem_limit_bytes=vmem_limit),
    )(x, dw, pw_arr, bias_arr)


def _reference(x_nchw, dw_w, pw_w, gamma, beta, run_mean, run_var, *, kernel_size, bn_eps):
    """Pure-JAX reference (lax convs) for verification."""
    C_in = x_nchw.shape[1]
    p = kernel_size // 2
    dn = lax.conv_dimension_numbers(x_nchw.shape, dw_w.shape, ("NCHW", "OIHW", "NCHW"))
    y = lax.conv_general_dilated(x_nchw, dw_w, window_strides=(1, 1),
                                 padding=((p, p), (p, p)),
                                 dimension_numbers=dn,
                                 feature_group_count=C_in)
    dn2 = lax.conv_dimension_numbers(y.shape, pw_w.shape, ("NCHW", "OIHW", "NCHW"))
    y = lax.conv_general_dilated(y, pw_w, window_strides=(1, 1),
                                 padding=((0, 0), (0, 0)),
                                 dimension_numbers=dn2)
    scale = (gamma / jnp.sqrt(run_var + bn_eps)).reshape(1, -1, 1, 1)
    bias = (beta - run_mean * gamma / jnp.sqrt(run_var + bn_eps)).reshape(1, -1, 1, 1)
    y = y * scale + bias
    return y * jax.nn.sigmoid(y)


if __name__ == "__main__":
    # Module config (SeparableConv2dBNSwish(i_c, o_c, k_s, bn_eps, bn_mom))
    i_c, o_c, k_s = 4, 8, 3
    bn_eps, bn_mom = 1e-3, 0.01   # bn_mom only affects training-mode stat updates

    N, H, W = 2, 16, 16

    key = jax.random.PRNGKey(0)
    kx, kdw, kpw, kg, kb, km, kv = jax.random.split(key, 7)

    x = jax.random.normal(kx, (N, i_c, H, W), dtype=jnp.float32)
    dw_w = jax.random.normal(kdw, (i_c, 1, k_s, k_s), dtype=jnp.float32) * 0.1
    pw_w = jax.random.normal(kpw, (o_c, i_c, 1, 1), dtype=jnp.float32) * 0.1
    gamma = jax.random.normal(kg, (o_c,), dtype=jnp.float32) * 0.1 + 1.0
    beta = jax.random.normal(kb, (o_c,), dtype=jnp.float32) * 0.1
    run_mean = jax.random.normal(km, (o_c,), dtype=jnp.float32) * 0.1
    run_var = jnp.abs(jax.random.normal(kv, (o_c,), dtype=jnp.float32)) * 0.5 + 0.5

    out = separable_conv2d_bn_swish(x, dw_w, pw_w, gamma, beta, run_mean, run_var,
                                    kernel_size=k_s, bn_eps=bn_eps)
    out = jax.block_until_ready(out)

    ref = _reference(x, dw_w, pw_w, gamma, beta, run_mean, run_var,
                     kernel_size=k_s, bn_eps=bn_eps)
    assert out.shape == (N, o_c, H, W), out.shape
    assert jnp.allclose(out, ref, atol=1e-4, rtol=1e-4), float(jnp.max(jnp.abs(out - ref)))

    print("KERNEL_OK")
</pallas_src>

<mosaic_0001>
module attributes {stable_mosaic.version = 11 : i64} {
  func.func @_sepconv_bn_swish_kernel(%arg0: i32, %arg1: i32, %arg2: memref<1x4x16x16xf32, #tpu.memory_space<vmem>>, %arg3: memref<9x4x1x1xf32, #tpu.memory_space<vmem>>, %arg4: memref<4x8x1x1xf32, #tpu.memory_space<vmem>>, %arg5: memref<8x1x1xf32, #tpu.memory_space<vmem>>, %arg6: memref<1x8x16x16xf32, #tpu.memory_space<vmem>>, %arg7: memref<4x18x18xf32, #tpu.memory_space<vmem>>) attributes {dimension_semantics = [#tpu.dimension_semantics<parallel>, #tpu.dimension_semantics<parallel>], iteration_bounds = array<i64: 2, 1>, scalar_prefetch = 0 : i64, scratch_operands = 1 : i64, tpu.core_type = #tpu.core_type<tc>, window_params = [{transform_indices = @transform_0, window_bounds = array<i64: 1, 4, 16, 16>}, {pipeline_mode = #tpu.pipeline_mode<synchronous>, transform_indices = @transform_1, window_bounds = array<i64: 9, 4, 1, 1>}, {pipeline_mode = #tpu.pipeline_mode<synchronous>, transform_indices = @transform_2, window_bounds = array<i64: 4, 8, 1, 1>}, {pipeline_mode = #tpu.pipeline_mode<synchronous>, transform_indices = @transform_3, window_bounds = array<i64: 8, 1, 1>}, {transform_indices = @transform_4, window_bounds = array<i64: 1, 8, 16, 16>}]} {
    %c0 = arith.constant 0 : index
    %c0_0 = arith.constant 0 : index
    %c0_1 = arith.constant 0 : index
    %c0_2 = arith.constant 0 : index
    %0 = vector.load %arg2[%c0, %c0_0, %c0_1, %c0_2] : memref<1x4x16x16xf32, #tpu.memory_space<vmem>>, vector<1x4x16x16xf32>
    %1 = vector.shape_cast %0 : vector<1x4x16x16xf32> to vector<4x16x16xf32>
    %c0_3 = arith.constant 0 : index
    %c1 = arith.constant 1 : index
    %c1_4 = arith.constant 1 : index
    %2 = vector.load %arg7[%c0_3, %c1, %c1_4] : memref<4x18x18xf32, #tpu.memory_space<vmem>>, vector<4x16x16xf32>
    tpu.vector_store %arg7[%c0_3, %c1, %c1_4], %1 {strides = array<i32>} : memref<4x18x18xf32, #tpu.memory_space<vmem>>, vector<4x16x16xf32>,
    %cst = arith.constant 0.000000e+00 : f32
    %3 = vector.broadcast %cst : f32 to vector<4x18x1xf32>
    %c0_5 = arith.constant 0 : index
    %c0_6 = arith.constant 0 : index
    %c0_7 = arith.constant 0 : index
    %4 = vector.load %arg7[%c0_5, %c0_6, %c0_7] : memref<4x18x18xf32, #tpu.memory_space<vmem>>, vector<4x18x1xf32>
    tpu.vector_store %arg7[%c0_5, %c0_6, %c0_7], %3 {strides = array<i32>} : memref<4x18x18xf32, #tpu.memory_space<vmem>>, vector<4x18x1xf32>,
    %c0_8 = arith.constant 0 : index
    %c0_9 = arith.constant 0 : index
    %c17 = arith.constant 17 : index
    %5 = vector.load %arg7[%c0_8, %c0_9, %c17] : memref<4x18x18xf32, #tpu.memory_space<vmem>>, vector<4x18x1xf32>
    tpu.vector_store %arg7[%c0_8, %c0_9, %c17], %3 {strides = array<i32>} : memref<4x18x18xf32, #tpu.memory_space<vmem>>, vector<4x18x1xf32>,
    %cst_10 = arith.constant 0.000000e+00 : f32
    %6 = vector.broadcast %cst_10 : f32 to vector<4x1x16xf32>
    %c0_11 = arith.constant 0 : index
    %c0_12 = arith.constant 0 : index
    %c1_13 = arith.constant 1 : index
    %7 = vector.load %arg7[%c0_11, %c0_12, %c1_13] : memref<4x18x18xf32, #tpu.memory_space<vmem>>, vector<4x1x16xf32>
    tpu.vector_store %arg7[%c0_11, %c0_12, %c1_13], %6 {strides = array<i32>} : memref<4x18x18xf32, #tpu.memory_space<vmem>>, vector<4x1x16xf32>,
    %c0_14 = arith.constant 0 : index
    %c17_15 = arith.constant 17 : index
    %c1_16 = arith.constant 1 : index
    %8 = vector.load %arg7[%c0_14, %c17_15, %c1_16] : memref<4x18x18xf32, #tpu.memory_space<vmem>>, vector<4x1x16xf32>
    tpu.vector_store %arg7[%c0_14, %c17_15, %c1_16], %6 {strides = array<i32>} : memref<4x18x18xf32, #tpu.memory_space<vmem>>, vector<4x1x16xf32>,
    %c0_17 = arith.constant 0 : index
    %c0_18 = arith.constant 0 : index
    %c0_19 = arith.constant 0 : index
    %c0_20 = arith.constant 0 : index
    %9 = vector.load %arg3[%c0_17, %c0_18, %c0_19, %c0_20] : memref<9x4x1x1xf32, #tpu.memory_space<vmem>>, vector<9x4x1x1xf32>
    %c0_21 = arith.constant 0 : index
    %c0_22 = arith.constant 0 : index
    %c0_23 = arith.constant 0 : index
    %10 = vector.load %arg7[%c0_21, %c0_22, %c0_23] : memref<4x18x18xf32, #tpu.memory_space<vmem>>, vector<4x16x16xf32>
    %11 = vector.extract_strided_slice %9 {offsets = [0, 0, 0, 0], sizes = [1, 4, 1, 1], strides = [1, 1, 1, 1]} : vector<9x4x1x1xf32> to vector<1x4x1x1xf32>
    %12 = vector.shape_cast %11 : vector<1x4x1x1xf32> to vector<4x1x1xf32>
    %13 = vector.broadcast %12 : vector<4x1x1xf32> to vector<4x16x16xf32>
    %14 = arith.mulf %10, %13 : vector<4x16x16xf32>
    %c0_24 = arith.constant 0 : index
    %c0_25 = arith.constant 0 : index
    %c1_26 = arith.constant 1 : index
    %15 = vector.load %arg7[%c0_24, %c0_25, %c1_26] : memref<4x18x18xf32, #tpu.memory_space<vmem>>, vector<4x16x16xf32>
    %16 = vector.extract_strided_slice %9 {offsets = [1, 0, 0, 0], sizes = [1, 4, 1, 1], strides = [1, 1, 1, 1]} : vector<9x4x1x1xf32> to vector<1x4x1x1xf32>
    %17 = vector.shape_cast %16 : vector<1x4x1x1xf32> to vector<4x1x1xf32>
    %18 = vector.broadcast %17 : vector<4x1x1xf32> to vector<4x16x16xf32>
    %19 = arith.mulf %15, %18 : vector<4x16x16xf32>
    %20 = arith.addf %14, %19 : vector<4x16x16xf32>
    %c0_27 = arith.constant 0 : index
    %c0_28 = arith.constant 0 : index
    %c2 = arith.constant 2 : index
    %21 = vector.load %arg7[%c0_27, %c0_28, %c2] : memref<4x18x18xf32, #tpu.memory_space<vmem>>, vector<4x16x16xf32>
    %22 = vector.extract_strided_slice %9 {offsets = [2, 0, 0, 0], sizes = [1, 4, 1, 1], strides = [1, 1, 1, 1]} : vector<9x4x1x1xf32> to vector<1x4x1x1xf32>
    %23 = vector.shape_cast %22 : vector<1x4x1x1xf32> to vector<4x1x1xf32>
    %24 = vector.broadcast %23 : vector<4x1x1xf32> to vector<4x16x16xf32>
    %25 = arith.mulf %21, %24 : vector<4x16x16xf32>
    %26 = arith.addf %20, %25 : vector<4x16x16xf32>
    %c0_29 = arith.constant 0 : index
    %c1_30 = arith.constant 1 : index
    %c0_31 = arith.constant 0 : index
    %27 = vector.load %arg7[%c0_29, %c1_30, %c0_31] : memref<4x18x18xf32, #tpu.memory_space<vmem>>, vector<4x16x16xf32>
    %28 = vector.extract_strided_slice %9 {offsets = [3, 0, 0, 0], sizes = [1, 4, 1, 1], strides = [1, 1, 1, 1]} : vector<9x4x1x1xf32> to vector<1x4x1x1xf32>
    %29 = vector.shape_cast %28 : vector<1x4x1x1xf32> to vector<4x1x1xf32>
    %30 = vector.broadcast %29 : vector<4x1x1xf32> to vector<4x16x16xf32>
    %31 = arith.mulf %27, %30 : vector<4x16x16xf32>
    %32 = arith.addf %26, %31 : vector<4x16x16xf32>
    %c0_32 = arith.constant 0 : index
    %c1_33 = arith.constant 1 : index
    %c1_34 = arith.constant 1 : index
    %33 = vector.load %arg7[%c0_32, %c1_33, %c1_34] : memref<4x18x18xf32, #tpu.memory_space<vmem>>, vector<4x16x16xf32>
    %34 = vector.extract_strided_slice %9 {offsets = [4, 0, 0, 0], sizes = [1, 4, 1, 1], strides = [1, 1, 1, 1]} : vector<9x4x1x1xf32> to vector<1x4x1x1xf32>
    %35 = vector.shape_cast %34 : vector<1x4x1x1xf32> to vector<4x1x1xf32>
    %36 = vector.broadcast %35 : vector<4x1x1xf32> to vector<4x16x16xf32>
    %37 = arith.mulf %33, %36 : vector<4x16x16xf32>
    %38 = arith.addf %32, %37 : vector<4x16x16xf32>
    %c0_35 = arith.constant 0 : index
    %c1_36 = arith.constant 1 : index
    %c2_37 = arith.constant 2 : index
    %39 = vector.load %arg7[%c0_35, %c1_36, %c2_37] : memref<4x18x18xf32, #tpu.memory_space<vmem>>, vector<4x16x16xf32>
    %40 = vector.extract_strided_slice %9 {offsets = [5, 0, 0, 0], sizes = [1, 4, 1, 1], strides = [1, 1, 1, 1]} : vector<9x4x1x1xf32> to vector<1x4x1x1xf32>
    %41 = vector.shape_cast %40 : vector<1x4x1x1xf32> to vector<4x1x1xf32>
    %42 = vector.broadcast %41 : vector<4x1x1xf32> to vector<4x16x16xf32>
    %43 = arith.mulf %39, %42 : vector<4x16x16xf32>
    %44 = arith.addf %38, %43 : vector<4x16x16xf32>
    %c0_38 = arith.constant 0 : index
    %c2_39 = arith.constant 2 : index
    %c0_40 = arith.constant 0 : index
    %45 = vector.load %arg7[%c0_38, %c2_39, %c0_40] : memref<4x18x18xf32, #tpu.memory_space<vmem>>, vector<4x16x16xf32>
    %46 = vector.extract_strided_slice %9 {offsets = [6, 0, 0, 0], sizes = [1, 4, 1, 1], strides = [1, 1, 1, 1]} : vector<9x4x1x1xf32> to vector<1x4x1x1xf32>
    %47 = vector.shape_cast %46 : vector<1x4x1x1xf32> to vector<4x1x1xf32>
    %48 = vector.broadcast %47 : vector<4x1x1xf32> to vector<4x16x16xf32>
    %49 = arith.mulf %45, %48 : vector<4x16x16xf32>
    %50 = arith.addf %44, %49 : vector<4x16x16xf32>
    %c0_41 = arith.constant 0 : index
    %c2_42 = arith.constant 2 : index
    %c1_43 = arith.constant 1 : index
    %51 = vector.load %arg7[%c0_41, %c2_42, %c1_43] : memref<4x18x18xf32, #tpu.memory_space<vmem>>, vector<4x16x16xf32>
    %52 = vector.extract_strided_slice %9 {offsets = [7, 0, 0, 0], sizes = [1, 4, 1, 1], strides = [1, 1, 1, 1]} : vector<9x4x1x1xf32> to vector<1x4x1x1xf32>
    %53 = vector.shape_cast %52 : vector<1x4x1x1xf32> to vector<4x1x1xf32>
    %54 = vector.broadcast %53 : vector<4x1x1xf32> to vector<4x16x16xf32>
    %55 = arith.mulf %51, %54 : vector<4x16x16xf32>
    %56 = arith.addf %50, %55 : vector<4x16x16xf32>
    %c0_44 = arith.constant 0 : index
    %c2_45 = arith.constant 2 : index
    %c2_46 = arith.constant 2 : index
    %57 = vector.load %arg7[%c0_44, %c2_45, %c2_46] : memref<4x18x18xf32, #tpu.memory_space<vmem>>, vector<4x16x16xf32>
    %58 = vector.extract_strided_slice %9 {offsets = [8, 0, 0, 0], sizes = [1, 4, 1, 1], strides = [1, 1, 1, 1]} : vector<9x4x1x1xf32> to vector<1x4x1x1xf32>
    %59 = vector.shape_cast %58 : vector<1x4x1x1xf32> to vector<4x1x1xf32>
    %60 = vector.broadcast %59 : vector<4x1x1xf32> to vector<4x16x16xf32>
    %61 = arith.mulf %57, %60 : vector<4x16x16xf32>
    %62 = arith.addf %56, %61 : vector<4x16x16xf32>
    %c0_47 = arith.constant 0 : index
    %c0_48 = arith.constant 0 : index
    %c0_49 = arith.constant 0 : index
    %c0_50 = arith.constant 0 : index
    %63 = vector.load %arg4[%c0_47, %c0_48, %c0_49, %c0_50] : memref<4x8x1x1xf32, #tpu.memory_space<vmem>>, vector<4x8x1x1xf32>
    %64 = vector.extract_strided_slice %62 {offsets = [0, 0, 0], sizes = [1, 16, 16], strides = [1, 1, 1]} : vector<4x16x16xf32> to vector<1x16x16xf32>
    %65 = vector.extract_strided_slice %63 {offsets = [0, 0, 0, 0], sizes = [1, 8, 1, 1], strides = [1, 1, 1, 1]} : vector<4x8x1x1xf32> to vector<1x8x1x1xf32>
    %66 = vector.shape_cast %65 : vector<1x8x1x1xf32> to vector<8x1x1xf32>
    %67 = vector.broadcast %64 : vector<1x16x16xf32> to vector<8x16x16xf32>
    %68 = vector.broadcast %66 : vector<8x1x1xf32> to vector<8x16x16xf32>
    %69 = arith.mulf %67, %68 : vector<8x16x16xf32>
    %70 = vector.extract_strided_slice %62 {offsets = [1, 0, 0], sizes = [1, 16, 16], strides = [1, 1, 1]} : vector<4x16x16xf32> to vector<1x16x16xf32>
    %71 = vector.extract_strided_slice %63 {offsets = [1, 0, 0, 0], sizes = [1, 8, 1, 1], strides = [1, 1, 1, 1]} : vector<4x8x1x1xf32> to vector<1x8x1x1xf32>
    %72 = vector.shape_cast %71 : vector<1x8x1x1xf32> to vector<8x1x1xf32>
    %73 = vector.broadcast %70 : vector<1x16x16xf32> to vector<8x16x16xf32>
    %74 = vector.broadcast %72 : vector<8x1x1xf32> to vector<8x16x16xf32>
    %75 = arith.mulf %73, %74 : vector<8x16x16xf32>
    %76 = arith.addf %69, %75 : vector<8x16x16xf32>
    %77 = vector.extract_strided_slice %62 {offsets = [2, 0, 0], sizes = [1, 16, 16], strides = [1, 1, 1]} : vector<4x16x16xf32> to vector<1x16x16xf32>
    %78 = vector.extract_strided_slice %63 {offsets = [2, 0, 0, 0], sizes = [1, 8, 1, 1], strides = [1, 1, 1, 1]} : vector<4x8x1x1xf32> to vector<1x8x1x1xf32>
    %79 = vector.shape_cast %78 : vector<1x8x1x1xf32> to vector<8x1x1xf32>
    %80 = vector.broadcast %77 : vector<1x16x16xf32> to vector<8x16x16xf32>
    %81 = vector.broadcast %79 : vector<8x1x1xf32> to vector<8x16x16xf32>
    %82 = arith.mulf %80, %81 : vector<8x16x16xf32>
    %83 = arith.addf %76, %82 : vector<8x16x16xf32>
    %84 = vector.extract_strided_slice %62 {offsets = [3, 0, 0], sizes = [1, 16, 16], strides = [1, 1, 1]} : vector<4x16x16xf32> to vector<1x16x16xf32>
    %85 = vector.extract_strided_slice %63 {offsets = [3, 0, 0, 0], sizes = [1, 8, 1, 1], strides = [1, 1, 1, 1]} : vector<4x8x1x1xf32> to vector<1x8x1x1xf32>
    %86 = vector.shape_cast %85 : vector<1x8x1x1xf32> to vector<8x1x1xf32>
    %87 = vector.broadcast %84 : vector<1x16x16xf32> to vector<8x16x16xf32>
    %88 = vector.broadcast %86 : vector<8x1x1xf32> to vector<8x16x16xf32>
    %89 = arith.mulf %87, %88 : vector<8x16x16xf32>
    %90 = arith.addf %83, %89 : vector<8x16x16xf32>
    %c0_51 = arith.constant 0 : index
    %c0_52 = arith.constant 0 : index
    %c0_53 = arith.constant 0 : index
    %91 = vector.load %arg5[%c0_51, %c0_52, %c0_53] : memref<8x1x1xf32, #tpu.memory_space<vmem>>, vector<8x1x1xf32>
    %92 = vector.broadcast %91 : vector<8x1x1xf32> to vector<8x16x16xf32>
    %93 = arith.addf %90, %92 : vector<8x16x16xf32>
    %94 = arith.negf %93 : vector<8x16x16xf32>
    %95 = math.exp %94 : vector<8x16x16xf32>
    %cst_54 = arith.constant 1.000000e+00 : f32
    %96 = vector.broadcast %cst_54 : f32 to vector<8x16x16xf32>
    %97 = arith.addf %96, %95 : vector<8x16x16xf32>
    %98 = arith.divf %96, %97 : vector<8x16x16xf32>
    %99 = arith.mulf %93, %98 : vector<8x16x16xf32>
    %c0_55 = arith.constant 0 : index
    %c0_56 = arith.constant 0 : index
    %c0_57 = arith.constant 0 : index
    %c0_58 = arith.constant 0 : index
    %100 = vector.load %arg6[%c0_55, %c0_56, %c0_57, %c0_58] : memref<1x8x16x16xf32, #tpu.memory_space<vmem>>, vector<1x8x16x16xf32>
    %101 = vector.shape_cast %100 : vector<1x8x16x16xf32> to vector<8x16x16xf32>
    %102 = vector.shape_cast %99 : vector<8x16x16xf32> to vector<1x8x16x16xf32>
    tpu.vector_store %arg6[%c0_55, %c0_56, %c0_57, %c0_58], %102 {strides = array<i32>} : memref<1x8x16x16xf32, #tpu.memory_space<vmem>>, vector<1x8x16x16xf32>,
    return
  }
  func.func @transform_0(%arg0: i32, %arg1: i32) -> (i32, i32, i32, i32) {
    %c0_i32 = arith.constant 0 : i32
    %c0_i32_0 = arith.constant 0 : i32
    %c0_i32_1 = arith.constant 0 : i32
    %c0_i32_2 = arith.constant 0 : i32
    return %arg0, %c0_i32, %c0_i32_0, %c0_i32_1 : i32, i32, i32, i32
  }
  func.func @transform_1(%arg0: i32, %arg1: i32) -> (i32, i32, i32, i32) {
    %c0_i32 = arith.constant 0 : i32
    %c0_i32_0 = arith.constant 0 : i32
    %c0_i32_1 = arith.constant 0 : i32
    %c0_i32_2 = arith.constant 0 : i32
    %c0_i32_3 = arith.constant 0 : i32
    return %c0_i32, %c0_i32_0, %c0_i32_1, %c0_i32_2 : i32, i32, i32, i32
  }
  func.func @transform_2(%arg0: i32, %arg1: i32) -> (i32, i32, i32, i32) {
    %c0_i32 = arith.constant 0 : i32
    %c0_i32_0 = arith.constant 0 : i32
    %c0_i32_1 = arith.constant 0 : i32
    %c0_i32_2 = arith.constant 0 : i32
    %c0_i32_3 = arith.constant 0 : i32
    return %c0_i32, %c0_i32_0, %c0_i32_1, %c0_i32_2 : i32, i32, i32, i32
  }
  func.func @transform_3(%arg0: i32, %arg1: i32) -> (i32, i32, i32) {
    %c0_i32 = arith.constant 0 : i32
    %c0_i32_0 = arith.constant 0 : i32
    %c0_i32_1 = arith.constant 0 : i32
    %c0_i32_2 = arith.constant 0 : i32
    return %c0_i32, %c0_i32_0, %c0_i32_1 : i32, i32, i32
  }
  func.func @transform_4(%arg0: i32, %arg1: i32) -> (i32, i32, i32, i32) {
    %c0_i32 = arith.constant 0 : i32
    %c0_i32_0 = arith.constant 0 : i32
    %c0_i32_1 = arith.constant 0 : i32
    return %arg0, %c0_i32, %arg1, %c0_i32_0 : i32, i32, i32, i32
  }
}

</mosaic_0001>

<llo_original>
// kernel: tpu_custom_call.1
$region0: #{tpu_custom_call.1}
  #allocation0 [shape = 'u32[]', space=smem, size = 0x4, offset = 0x4, fixed_abs, tag = 'smem constant byte address 0x4 - core index']
  #allocation1 [shape = 'u32[144,128]{1,0:T(1,128)}', space=vmem, size = 0x12000, scoped, tag = 'internal scratch']
  #allocation2 [shape = 'f32[4,18,18]{2,1,0:T(8,128)}', space=vmem, size = 0xc000, scoped, tag = 'scratch operand']
  %s0 = inlined_call_operand.hbm [shape: f32[2,4,16,16], index: 0, kind: input, shape index: {}]
  %s1 = inlined_call_operand.vmem [shape: f32[9,4,1,1], index: 1, kind: input, shape index: {}]
  %s2 = inlined_call_operand.vmem [shape: f32[4,8,1,1], index: 2, kind: input, shape index: {}]
  %s3 = inlined_call_operand.vmem [shape: f32[8,1,1], index: 3, kind: input, shape index: {}]
  %s4 = inlined_call_operand.hbm [shape: f32[2,8,16,16], index: 4, kind: output, shape index: {}]
  %s5 = sld [smem:[#allocation0]]
  $region53: #{tpu_custom_call.1} parent=0
    _
  %s7 = ssub.s32 1, %s5
  %s8 = scalar_select 0, %s7, %s5
  $region1: #{tpu_custom_call.1} parent=0
    #allocation3 [shape = 'u8[65536]{0}', space=vmem, size = 0x10000, scoped, tag = 'input window, operand 0']
    #allocation4 [shape = 's32[2]{0}', space=sflag, size = 0x8, scoped, tag = 'scoped memory for tpu_custom_call.1']
    #allocation5 [shape = 's32[2]{0}', space=sflag, size = 0x8, scoped, tag = 'scoped memory for tpu_custom_call.1']
    #allocation6 [shape = 'u8[131072]{0}', space=vmem, size = 0x20000, scoped, tag = 'output window, operand 0']
    %9 = vsyncpa [#allocation4], 0
    %s10 = scalar_lea.sflag [#allocation4], 1
    %11 = vsyncpa %s10, 0
    %12 = vsyncpa [#allocation5], 0
    %s13 = scalar_lea.sflag [#allocation5], 1
    %14 = vsyncpa %s13, 0
    loop: start=0, step=1, limit=4
    $region2: #{tpu_custom_call.1} parent=1 // loop_pre_header
      _
    $region3: #{tpu_custom_call.1} parent=1 // loop_header
      %s16 = sphi 0, %s20
      %p17 = scmp.ge.s32.totalorder %s16, 4
      %s23 = sphi 0, %s35
      %s24 = sphi 0, %s31
      %s25 = sphi 0, %s23
      %s26 = sphi 0, %s24
      %s27 = sphi 0, %s25
      %s28 = sphi 0, %s26
      %s38 = sphi 0, %s40
      %s41 = sphi 0, %s38
      %s42 = sphi 0, %s41
      %s58 = sphi 0, %s42
      %s62 = sphi 0, %s62
      %s64 = sphi 0, %s62
      %s65 = sphi 0, %s64
      %s79 = sphi 0, %s65
      %s83 = sphi 0, %s83
      %s85 = sphi 0, %s83
      %s86 = sphi 0, %s85
      %s100 = sphi 0, %s86
      %s104 = sphi 0, %s104
      %s106 = sphi 0, %s104
      %s107 = sphi 0, %s106
      %s121 = sphi 0, %s107
      %s129 = sphi 0, %s131
      %s132 = sphi 0, %s129
      %s133 = sphi 0, %s132
      %s149 = sphi 0, %s133
    $region4: #{tpu_custom_call.1} parent=1 // loop_header_branch
      %19 = sbr.rel (%p17) target = $region8
    $region5: #{tpu_custom_call.1} parent=1 // loop_body
      %s21 = ssub.s32 %s16, 1
      %s22 = ssub.s32 %s16, 2
      %s29 = sadd.s32 1, %s24
      %p30 = scmp.ge.s32.totalorder %s29, 1
      %s31 = scalar_select %p30, 0, %s29
      %s32 = sadd.s32 1, %s23
      %s33 = scalar_select %p30, %s32, %s23
      %p34 = scmp.ge.s32.totalorder %s33, 2
      %s35 = scalar_select %p34, 0, %s33
      %s36 = ssub.s32 %s23, %s35
      %p37 = scmp.eq.s32.totalorder %s36, 0
      %s39 = sadd.s32 %s38, 1
      %s40 = scalar_select %p37, %s38, %s39
      %p43 = pneg %p37
      %p44 = scmp.eq.s32.totalorder %s16, 1
      %p45 = por %p43, %p44
      %p46 = scmp.ne.s32.totalorder %s38, %s41
      %p47 = scmp.eq.s32.totalorder %s16, 0
      %p48 = por %p46, %p47
      %p49 = scmp.ne.s32.totalorder %s38, %s41
      %p50 = scmp.eq.s32.totalorder %s21, 1
      %p51 = por %p49, %p50
      %p52 = scmp.ne.s32.totalorder %s41, %s42
      %p53 = scmp.eq.s32.totalorder %s21, 0
      %p54 = por %p52, %p53
      %p55 = scmp.ne.s32.totalorder %s41, %s42
      %p56 = scmp.eq.s32.totalorder %s22, 1
      %p57 = por %p55, %p56
      %p59 = scmp.ne.s32.totalorder %s42, %s58
      %p60 = scmp.eq.s32.totalorder %s22, 0
      %p61 = por %p59, %p60
      %s63 = sadd.s32 %s62, 1
      %p66 = scmp.eq.s32.totalorder %s16, 1
      %p67 = scmp.ne.s32.totalorder %s62, %s64
      %p68 = scmp.eq.s32.totalorder %s16, 0
      %p69 = por %p67, %p68
      %p70 = scmp.ne.s32.totalorder %s62, %s64
      %p71 = scmp.eq.s32.totalorder %s21, 1
      %p72 = por %p70, %p71
      %p73 = scmp.ne.s32.totalorder %s64, %s65
      %p74 = scmp.eq.s32.totalorder %s21, 0
      %p75 = por %p73, %p74
      %p76 = scmp.ne.s32.totalorder %s64, %s65
      %p77 = scmp.eq.s32.totalorder %s22, 1
      %p78 = por %p76, %p77
      %p80 = scmp.ne.s32.totalorder %s65, %s79
      %p81 = scmp.eq.s32.totalorder %s22, 0
      %p82 = por %p80, %p81
      %s84 = sadd.s32 %s83, 1
      %p87 = scmp.eq.s32.totalorder %s16, 1
      %p88 = scmp.ne.s32.totalorder %s83, %s85
      %p89 = scmp.eq.s32.totalorder %s16, 0
      %p90 = por %p88, %p89
      %p91 = scmp.ne.s32.totalorder %s83, %s85
      %p92 = scmp.eq.s32.totalorder %s21, 1
      %p93 = por %p91, %p92
      %p94 = scmp.ne.s32.totalorder %s85, %s86
      %p95 = scmp.eq.s32.totalorder %s21, 0
      %p96 = por %p94, %p95
      %p97 = scmp.ne.s32.totalorder %s85, %s86
      %p98 = scmp.eq.s32.totalorder %s22, 1
      %p99 = por %p97, %p98
      %p101 = scmp.ne.s32.totalorder %s86, %s100
      %p102 = scmp.eq.s32.totalorder %s22, 0
      %p103 = por %p101, %p102
      %s105 = sadd.s32 %s104, 1
      %p108 = scmp.eq.s32.totalorder %s16, 1
      %p109 = scmp.ne.s32.totalorder %s104, %s106
      %p110 = scmp.eq.s32.totalorder %s16, 0
      %p111 = por %p109, %p110
      %p112 = scmp.ne.s32.totalorder %s104, %s106
      %p113 = scmp.eq.s32.totalorder %s21, 1
      %p114 = por %p112, %p113
      %p115 = scmp.ne.s32.totalorder %s106, %s107
      %p116 = scmp.eq.s32.totalorder %s21, 0
      %p117 = por %p115, %p116
      %p118 = scmp.ne.s32.totalorder %s106, %s107
      %p119 = scmp.eq.s32.totalorder %s22, 1
      %p120 = por %p118, %p119
      %p122 = scmp.ne.s32.totalorder %s107, %s121
      %p123 = scmp.eq.s32.totalorder %s22, 0
      %p124 = por %p122, %p123
      %s125 = ssub.s32 %s23, %s35
      %s126 = ssub.s32 %s24, %s31
      %s127 = sor.u32 %s125, %s126
      %p128 = scmp.eq.s32.totalorder %s127, 0
      %s130 = sadd.s32 %s129, 1
      %s131 = scalar_select %p128, %s129, %s130
      %p134 = pneg %p128
      %p135 = scmp.eq.s32.totalorder %s16, 1
      %p136 = por %p134, %p135
      %p137 = scmp.ne.s32.totalorder %s129, %s132
      %p138 = scmp.eq.s32.totalorder %s16, 0
      %p139 = por %p137, %p138
      %p140 = scmp.ne.s32.totalorder %s129, %s132
      %p141 = scmp.eq.s32.totalorder %s21, 1
      %p142 = por %p140, %p141
      %p143 = scmp.ne.s32.totalorder %s132, %s133
      %p144 = scmp.eq.s32.totalorder %s21, 0
      %p145 = por %p143, %p144
      %p146 = scmp.ne.s32.totalorder %s132, %s133
      %p147 = scmp.eq.s32.totalorder %s22, 1
      %p148 = por %p146, %p147
      %p150 = scmp.ne.s32.totalorder %s133, %s149
      %p151 = scmp.eq.s32.totalorder %s22, 0
      %p152 = por %p150, %p151
      %p153 = scmp.le.s32.totalorder 1, %s16
      %p154 = scmp.lt.s32.totalorder %s16, 3
      %p155 = pnand %p153, %p154
      %p156 = pneg %p155
      // Predicated region
      $region9: #{tpu_custom_call.1} parent=5 // pred_check
        _
      $region10: #{tpu_custom_call.1} parent=5 // pred_check_branch
        %158 = sbr.rel (%p155) target = $region12
      $region11: #{tpu_custom_call.1} parent=5 // pred_region
        %s159 = ssub.s32 %s16, 1
        // Predicated region
        $region13: #{tpu_custom_call.1} parent=11 // pred_check
          %p160 = pneg %p75
        $region14: #{tpu_custom_call.1} parent=11 // pred_check_branch
          %162 = sbr.rel (%p160) target = $region16
        $region15: #{tpu_custom_call.1} parent=11 // pred_region
          _
        $region16: #{tpu_custom_call.1} parent=11 // pred_fallthru
          _
        // Predicated region
        $region17: #{tpu_custom_call.1} parent=11 // pred_check
          %p163 = pneg %p96
        $region18: #{tpu_custom_call.1} parent=11 // pred_check_branch
          %165 = sbr.rel (%p163) target = $region20
        $region19: #{tpu_custom_call.1} parent=11 // pred_region
          _
        $region20: #{tpu_custom_call.1} parent=11 // pred_fallthru
          _
        // Predicated region
        $region21: #{tpu_custom_call.1} parent=11 // pred_check
          %p166 = pneg %p117
        $region22: #{tpu_custom_call.1} parent=11 // pred_check_branch
          %168 = sbr.rel (%p166) target = $region24
        $region23: #{tpu_custom_call.1} parent=11 // pred_region
          _
        $region24: #{tpu_custom_call.1} parent=11 // pred_fallthru
          _
      $region12: #{tpu_custom_call.1} parent=5 // pred_fallthru
        _
      %p169 = scmp.lt.s32.totalorder %s16, 2
      // Predicated region
      $region25: #{tpu_custom_call.1} parent=5 // pred_check
        %p170 = pneg %p169
      $region26: #{tpu_custom_call.1} parent=5 // pred_check_branch
        %172 = sbr.rel (%p170) target = $region28
      $region27: #{tpu_custom_call.1} parent=5 // pred_region
        // Predicated region
        $region29: #{tpu_custom_call.1} parent=27 // pred_check
          %p173 = pneg %p48
        $region30: #{tpu_custom_call.1} parent=27 // pred_check_branch
          %175 = sbr.rel (%p173) target = $region32
        $region31: #{tpu_custom_call.1} parent=27 // pred_region
          %s176 = sand.u32 %s38, 1
          %s177 = scalar_lea.sflag [#allocation4], %s176
          %s178 = sand.u32 %s38, 1
          %s179 = smul.addr %s178, 64
          %s180 = scalar_lea.vmem [#allocation3], %s179
          %s182 = ssub.s32 1024, 1024
          %183 = vsyncadd %s177, %s182
          %s184 = smul.addr %s23, 8
          %s185 = smul.addr %s184, 128
          %s186 = scalar_lea.hbm %s0, %s185
          %s187 = sshll.u32 %s180, 4
          %s188 = int_to_ptr.vmem [resolvable:$true] %s187
          %193 = dma.hbm_to_vmem [thread:$0]  %s186, 1024, %s188, %s177, 128, 128, 8
        $region32: #{tpu_custom_call.1} parent=27 // pred_fallthru
          _
      $region28: #{tpu_custom_call.1} parent=5 // pred_fallthru
        _
      %p194 = scmp.le.s32.totalorder 1, %s16
      %p195 = scmp.lt.s32.totalorder %s16, 3
      %p196 = pnand %p194, %p195
      %p197 = pneg %p196
      // Predicated region
      $region33: #{tpu_custom_call.1} parent=5 // pred_check
        _
      $region34: #{tpu_custom_call.1} parent=5 // pred_check_branch
        %199 = sbr.rel (%p196) target = $region36
      $region35: #{tpu_custom_call.1} parent=5 // pred_region
        %s200 = ssub.s32 %s16, 1
        %s201 = sand.u32 %s41, 1
        %s202 = scalar_lea.sflag [#allocation4], %s201
        %s203 = sand.u32 %s41, 1
        %s204 = smul.addr %s203, 64
        %s205 = scalar_lea.vmem [#allocation3], %s204
        // Predicated region
        $region37: #{tpu_custom_call.1} parent=35 // pred_check
          %p206 = pneg %p54
        $region38: #{tpu_custom_call.1} parent=35 // pred_check_branch
          %208 = sbr.rel (%p206) target = $region40
        $region39: #{tpu_custom_call.1} parent=35 // pred_region
          %209 = dma.done %s202, 1024
        $region40: #{tpu_custom_call.1} parent=35 // pred_fallthru
          _
        %s210 = sand.u32 %s41, 1
        %s211 = scalar_lea.sflag [#allocation4], %s210
        %s212 = sand.u32 %s41, 1
        %s213 = smul.addr %s212, 64
        %s214 = scalar_lea.vmem [#allocation3], %s213
        %p215 = pneg %p54
        %p216 = pneg %p51
        %p217 = pneg %p75
        %p218 = pneg %p72
        %p219 = pneg %p96
        %p220 = pneg %p93
        %p221 = pneg %p117
        %p222 = pneg %p114
        %p223 = pneg %p145
        %p224 = pneg %p142
        %s225 = sand.u32 %s132, 1
        %s226 = scalar_lea.sflag [#allocation5], %s225
        %s227 = sand.u32 %s132, 1
        %s228 = smul.addr %s227, 128
        %s229 = scalar_lea.vmem [#allocation6], %s228
        %s230 = smul.u32 2, %s26
        %v231 = vld [vmem:[%s205] sm:$0xff]
        %v232 = vld [vmem:[%s205 + $0x8] sm:$0xff]
        %v233 = vld [vmem:[%s205 + $0x10] sm:$0xff]
        %v234 = vld [vmem:[%s205 + $0x18] sm:$0xff]
        %v235 = vld [vmem:[%s205 + $0x20] sm:$0xff]
        %v236 = vld [vmem:[%s205 + $0x28] sm:$0xff]
        %v237 = vld [vmem:[%s205 + $0x30] sm:$0xff]
        %v238 = vld [vmem:[%s205 + $0x38] sm:$0xff]
        %247 = vrot.lane.b32.xlu0 %v231, 1
        %v248 = vpop.permute.xlu0 %247
        %249 = vrot.lane.b32.xlu0 %v232, 1
        %v250 = vpop.permute.xlu0 %249
        %251 = vrot.lane.b32.xlu0 %v233, 1
        %v252 = vpop.permute.xlu0 %251
        %253 = vrot.lane.b32.xlu0 %v234, 1
        %v254 = vpop.permute.xlu0 %253
        %255 = vrot.lane.b32.xlu0 %v235, 1
        %v256 = vpop.permute.xlu0 %255
        %257 = vrot.lane.b32.xlu0 %v236, 1
        %v258 = vpop.permute.xlu0 %257
        %259 = vrot.lane.b32.xlu0 %v237, 1
        %v260 = vpop.permute.xlu0 %259
        %261 = vrot.lane.b32.xlu0 %v238, 1
        %v262 = vpop.permute.xlu0 %261
        %vm271 = vcmask 138248
        %272 = vst.msk [vmem:[#allocation2 + $0x1] sm:$0xff] %vm271, %v248
        %273 = vst.msk [vmem:[#allocation2 + $0x9] sm:$0xff] %vm271, %v250
        %274 = vst.msk [vmem:[#allocation2 + $0x19] sm:$0xff] %vm271, %v252
        %275 = vst.msk [vmem:[#allocation2 + $0x21] sm:$0xff] %vm271, %v254
        %276 = vst.msk [vmem:[#allocation2 + $0x31] sm:$0xff] %vm271, %v256
        %277 = vst.msk [vmem:[#allocation2 + $0x39] sm:$0xff] %vm271, %v258
        %278 = vst.msk [vmem:[#allocation2 + $0x49] sm:$0xff] %vm271, %v260
        %279 = vst.msk [vmem:[#allocation2 + $0x51] sm:$0xff] %vm271, %v262
        %vm280 = vcmask 7168
        %281 = vst.msk [vmem:[#allocation2] sm:$0xff] %vm280, 0.0
        %282 = vst.msk [vmem:[#allocation2 + $0x8] sm:$0xff] %vm280, 0.0
        %vm283 = vcmask 1024
        %284 = vst.msk [vmem:[#allocation2 + $0x10] sm:$0x3] %vm283, 0.0
        %285 = vst.msk [vmem:[#allocation2 + $0x18] sm:$0xff] %vm280, 0.0
        %286 = vst.msk [vmem:[#allocation2 + $0x20] sm:$0xff] %vm280, 0.0
        %287 = vst.msk [vmem:[#allocation2 + $0x28] sm:$0x3] %vm283, 0.0
        %288 = vst.msk [vmem:[#allocation2 + $0x30] sm:$0xff] %vm280, 0.0
        %289 = vst.msk [vmem:[#allocation2 + $0x38] sm:$0xff] %vm280, 0.0
        %290 = vst.msk [vmem:[#allocation2 + $0x40] sm:$0x3] %vm283, 0.0
        %291 = vst.msk [vmem:[#allocation2 + $0x48] sm:$0xff] %vm280, 0.0
        %292 = vst.msk [vmem:[#allocation2 + $0x50] sm:$0xff] %vm280, 0.0
        %293 = vst.msk [vmem:[#allocation2 + $0x58] sm:$0x3] %vm283, 0.0
        %vm294 = vcmask 146568
        %295 = vst.msk [vmem:[#allocation2] sm:$0xff] %vm294, 0.0
        %296 = vst.msk [vmem:[#allocation2 + $0x8] sm:$0xff] %vm294, 0.0
        %vm297 = vcmask 140424
        %298 = vst.msk [vmem:[#allocation2 + $0x10] sm:$0x3] %vm297, 0.0
        %299 = vst.msk [vmem:[#allocation2 + $0x18] sm:$0xff] %vm294, 0.0
        %300 = vst.msk [vmem:[#allocation2 + $0x20] sm:$0xff] %vm294, 0.0
        %301 = vst.msk [vmem:[#allocation2 + $0x28] sm:$0x3] %vm297, 0.0
        %302 = vst.msk [vmem:[#allocation2 + $0x30] sm:$0xff] %vm294, 0.0
        %303 = vst.msk [vmem:[#allocation2 + $0x38] sm:$0xff] %vm294, 0.0
        %304 = vst.msk [vmem:[#allocation2 + $0x40] sm:$0x3] %vm297, 0.0
        %305 = vst.msk [vmem:[#allocation2 + $0x48] sm:$0xff] %vm294, 0.0
        %306 = vst.msk [vmem:[#allocation2 + $0x50] sm:$0xff] %vm294, 0.0
        %307 = vst.msk [vmem:[#allocation2 + $0x58] sm:$0x3] %vm297, 0.0
        %vm308 = vcmask 131080
        %309 = vst.msk [vmem:[#allocation2] sm:$0x1] %vm308, 0.0
        %310 = vst.msk [vmem:[#allocation2 + $0x18] sm:$0x1] %vm308, 0.0
        %311 = vst.msk [vmem:[#allocation2 + $0x30] sm:$0x1] %vm308, 0.0
        %312 = vst.msk [vmem:[#allocation2 + $0x48] sm:$0x1] %vm308, 0.0
        %313 = vst.msk [vmem:[#allocation2 + $0x11] sm:$0x1] %vm308, 0.0
        %314 = vst.msk [vmem:[#allocation2 + $0x29] sm:$0x1] %vm308, 0.0
        %315 = vst.msk [vmem:[#allocation2 + $0x41] sm:$0x1] %vm308, 0.0
        %316 = vst.msk [vmem:[#allocation2 + $0x59] sm:$0x1] %vm308, 0.0
        %v317 = vld [vmem:[%s1] sm:$0x1]
        %v318 = vld [vmem:[%s1 + $0x1] sm:$0x1]
        %v319 = vld [vmem:[%s1 + $0x2] sm:$0x1]
        %v320 = vld [vmem:[%s1 + $0x3] sm:$0x1]
        %v321 = vld [vmem:[%s1 + $0x4] sm:$0x1]
        %v322 = vld [vmem:[%s1 + $0x5] sm:$0x1]
        %v323 = vld [vmem:[%s1 + $0x6] sm:$0x1]
        %v324 = vld [vmem:[%s1 + $0x7] sm:$0x1]
        %v325 = vld [vmem:[%s1 + $0x8] sm:$0x1]
        %v326 = vld [vmem:[%s1 + $0x9] sm:$0x1]
        %v327 = vld [vmem:[%s1 + $0xa] sm:$0x1]
        %v328 = vld [vmem:[%s1 + $0xb] sm:$0x1]
        %v329 = vld [vmem:[%s1 + $0xc] sm:$0x1]
        %v330 = vld [vmem:[%s1 + $0xd] sm:$0x1]
        %v331 = vld [vmem:[%s1 + $0xe] sm:$0x1]
        %v332 = vld [vmem:[%s1 + $0xf] sm:$0x1]
        %v333 = vld [vmem:[%s1 + $0x10] sm:$0x1]
        %v334 = vld [vmem:[%s1 + $0x11] sm:$0x1]
        %v335 = vld [vmem:[%s1 + $0x12] sm:$0x1]
        %v336 = vld [vmem:[%s1 + $0x13] sm:$0x1]
        %v337 = vld [vmem:[%s1 + $0x14] sm:$0x1]
        %v338 = vld [vmem:[%s1 + $0x15] sm:$0x1]
        %v339 = vld [vmem:[%s1 + $0x16] sm:$0x1]
        %v340 = vld [vmem:[%s1 + $0x17] sm:$0x1]
        %v341 = vld [vmem:[%s1 + $0x18] sm:$0x1]
        %v342 = vld [vmem:[%s1 + $0x19] sm:$0x1]
        %v343 = vld [vmem:[%s1 + $0x1a] sm:$0x1]
        %v344 = vld [vmem:[%s1 + $0x1b] sm:$0x1]
        %v345 = vld [vmem:[%s1 + $0x1c] sm:$0x1]
        %v346 = vld [vmem:[%s1 + $0x1d] sm:$0x1]
        %v347 = vld [vmem:[%s1 + $0x1e] sm:$0x1]
        %v348 = vld [vmem:[%s1 + $0x1f] sm:$0x1]
        %v349 = vld [vmem:[%s1 + $0x20] sm:$0x1]
        %v350 = vld [vmem:[%s1 + $0x21] sm:$0x1]
        %v351 = vld [vmem:[%s1 + $0x22] sm:$0x1]
        %v352 = vld [vmem:[%s1 + $0x23] sm:$0x1]
        %v353 = vld [vmem:[#allocation2] sm:$0xff]
        %v354 = vld [vmem:[#allocation2 + $0x8] sm:$0xff]
        %v355 = vld [vmem:[#allocation2 + $0x18] sm:$0xff]
        %v356 = vld [vmem:[#allocation2 + $0x20] sm:$0xff]
        %v357 = vld [vmem:[#allocation2 + $0x30] sm:$0xff]
        %v358 = vld [vmem:[#allocation2 + $0x38] sm:$0xff]
        %v359 = vld [vmem:[#allocation2 + $0x48] sm:$0xff]
        %v360 = vld [vmem:[#allocation2 + $0x50] sm:$0xff]
        %v365 = vlaneseq
        %v366 = vshrl.u32 %v365, 7
        %v367 = vsub.s32 0, %v366
        %v368 = vrot.slane %v317, %v367
        %v369 = vlaneseq
        %v370 = vshrl.u32 %v369, 7
        %v371 = vsub.s32 0, %v370
        %v372 = vrot.slane %v318, %v371
        %v373 = vlaneseq
        %v374 = vshrl.u32 %v373, 7
        %v375 = vsub.s32 0, %v374
        %v376 = vrot.slane %v319, %v375
        %v377 = vlaneseq
        %v378 = vshrl.u32 %v377, 7
        %v379 = vsub.s32 0, %v378
        %v380 = vrot.slane %v320, %v379
        %381 = vset.pattern.permute.xlu0 0
        %382 = vperm.xlu0 %381, %v368
        %v383 = vpop.permute.xlu0 %382
        %385 = vset.pattern.permute.xlu0 0
        %386 = vperm.xlu0 %385, %v372
        %v387 = vpop.permute.xlu0 %386
        %389 = vset.pattern.permute.xlu0 0
        %390 = vperm.xlu0 %389, %v376
        %v391 = vpop.permute.xlu0 %390
        %393 = vset.pattern.permute.xlu0 0
        %394 = vperm.xlu0 %393, %v380
        %v395 = vpop.permute.xlu0 %394
        %v397 = vmul.f32 %v353, %v383
        %v398 = vmul.f32 %v354, %v383
        %v399 = vmul.f32 %v355, %v387
        %v400 = vmul.f32 %v356, %v387
        %v401 = vmul.f32 %v357, %v391
        %v402 = vmul.f32 %v358, %v391
        %v403 = vmul.f32 %v359, %v395
        %v404 = vmul.f32 %v360, %v395
        %v409 = vlaneseq
        %v410 = vshrl.u32 %v409, 7
        %v411 = vsub.s32 0, %v410
        %v412 = vrot.slane %v321, %v411
        %v413 = vlaneseq
        %v414 = vshrl.u32 %v413, 7
        %v415 = vsub.s32 0, %v414
        %v416 = vrot.slane %v322, %v415
        %v417 = vlaneseq
        %v418 = vshrl.u32 %v417, 7
        %v419 = vsub.s32 0, %v418
        %v420 = vrot.slane %v323, %v419
        %v421 = vlaneseq
        %v422 = vshrl.u32 %v421, 7
        %v423 = vsub.s32 0, %v422
        %v424 = vrot.slane %v324, %v423
        %425 = vset.pattern.permute.xlu0 0
        %426 = vperm.xlu0 %425, %v412
        %v427 = vpop.permute.xlu0 %426
        %429 = vset.pattern.permute.xlu0 0
        %430 = vperm.xlu0 %429, %v416
        %v431 = vpop.permute.xlu0 %430
        %433 = vset.pattern.permute.xlu0 0
        %434 = vperm.xlu0 %433, %v420
        %v435 = vpop.permute.xlu0 %434
        %437 = vset.pattern.permute.xlu0 0
        %438 = vperm.xlu0 %437, %v424
        %v439 = vpop.permute.xlu0 %438
        %v441 = vmul.f32 %v353, %v427
        %v442 = vmul.f32 %v354, %v427
        %v443 = vmul.f32 %v355, %v431
        %v444 = vmul.f32 %v356, %v431
        %v445 = vmul.f32 %v357, %v435
        %v446 = vmul.f32 %v358, %v435
        %v447 = vmul.f32 %v359, %v439
        %v448 = vmul.f32 %v360, %v439
        %457 = vrot.lane.b32.xlu0 %v441, 127
        %v458 = vpop.permute.xlu0 %457
        %459 = vrot.lane.b32.xlu0 %v442, 127
        %v460 = vpop.permute.xlu0 %459
        %461 = vrot.lane.b32.xlu0 %v443, 127
        %v462 = vpop.permute.xlu0 %461
        %463 = vrot.lane.b32.xlu0 %v444, 127
        %v464 = vpop.permute.xlu0 %463
        %465 = vrot.lane.b32.xlu0 %v445, 127
        %v466 = vpop.permute.xlu0 %465
        %467 = vrot.lane.b32.xlu0 %v446, 127
        %v468 = vpop.permute.xlu0 %467
        %469 = vrot.lane.b32.xlu0 %v447, 127
        %v470 = vpop.permute.xlu0 %469
        %471 = vrot.lane.b32.xlu0 %v448, 127
        %v472 = vpop.permute.xlu0 %471
        %v481 = vadd.f32 %v397, %v458
        %v482 = vadd.f32 %v398, %v460
        %v483 = vadd.f32 %v399, %v462
        %v484 = vadd.f32 %v400, %v464
        %v485 = vadd.f32 %v401, %v466
        %v486 = vadd.f32 %v402, %v468
        %v487 = vadd.f32 %v403, %v470
        %v488 = vadd.f32 %v404, %v472
        %v493 = vlaneseq
        %v494 = vshrl.u32 %v493, 7
        %v495 = vsub.s32 0, %v494
        %v496 = vrot.slane %v325, %v495
        %v497 = vlaneseq
        %v498 = vshrl.u32 %v497, 7
        %v499 = vsub.s32 0, %v498
        %v500 = vrot.slane %v326, %v499
        %v501 = vlaneseq
        %v502 = vshrl.u32 %v501, 7
        %v503 = vsub.s32 0, %v502
        %v504 = vrot.slane %v327, %v503
        %v505 = vlaneseq
        %v506 = vshrl.u32 %v505, 7
        %v507 = vsub.s32 0, %v506
        %v508 = vrot.slane %v328, %v507
        %509 = vset.pattern.permute.xlu0 0
        %510 = vperm.xlu0 %509, %v496
        %v511 = vpop.permute.xlu0 %510
        %513 = vset.pattern.permute.xlu0 0
        %514 = vperm.xlu0 %513, %v500
        %v515 = vpop.permute.xlu0 %514
        %517 = vset.pattern.permute.xlu0 0
        %518 = vperm.xlu0 %517, %v504
        %v519 = vpop.permute.xlu0 %518
        %521 = vset.pattern.permute.xlu0 0
        %522 = vperm.xlu0 %521, %v508
        %v523 = vpop.permute.xlu0 %522
        %v525 = vmul.f32 %v353, %v511
        %v526 = vmul.f32 %v354, %v511
        %v527 = vmul.f32 %v355, %v515
        %v528 = vmul.f32 %v356, %v515
        %v529 = vmul.f32 %v357, %v519
        %v530 = vmul.f32 %v358, %v519
        %v531 = vmul.f32 %v359, %v523
        %v532 = vmul.f32 %v360, %v523
        %541 = vrot.lane.b32.xlu0 %v525, 126
        %v542 = vpop.permute.xlu0 %541
        %543 = vrot.lane.b32.xlu0 %v526, 126
        %v544 = vpop.permute.xlu0 %543
        %545 = vrot.lane.b32.xlu0 %v527, 126
        %v546 = vpop.permute.xlu0 %545
        %547 = vrot.lane.b32.xlu0 %v528, 126
        %v548 = vpop.permute.xlu0 %547
        %549 = vrot.lane.b32.xlu0 %v529, 126
        %v550 = vpop.permute.xlu0 %549
        %551 = vrot.lane.b32.xlu0 %v530, 126
        %v552 = vpop.permute.xlu0 %551
        %553 = vrot.lane.b32.xlu0 %v531, 126
        %v554 = vpop.permute.xlu0 %553
        %555 = vrot.lane.b32.xlu0 %v532, 126
        %v556 = vpop.permute.xlu0 %555
        %v565 = vadd.f32 %v481, %v542
        %v566 = vadd.f32 %v482, %v544
        %v567 = vadd.f32 %v483, %v546
        %v568 = vadd.f32 %v484, %v548
        %v569 = vadd.f32 %v485, %v550
        %v570 = vadd.f32 %v486, %v552
        %v571 = vadd.f32 %v487, %v554
        %v572 = vadd.f32 %v488, %v556
        %v573 = vld [vmem:[#allocation2 + $0x1] sm:$0xff]
        %v574 = vld [vmem:[#allocation2 + $0x9] sm:$0xff]
        %v575 = vld [vmem:[#allocation2 + $0x19] sm:$0xff]
        %v576 = vld [vmem:[#allocation2 + $0x21] sm:$0xff]
        %v577 = vld [vmem:[#allocation2 + $0x31] sm:$0xff]
        %v578 = vld [vmem:[#allocation2 + $0x39] sm:$0xff]
        %v579 = vld [vmem:[#allocation2 + $0x49] sm:$0xff]
        %v580 = vld [vmem:[#allocation2 + $0x51] sm:$0xff]
        %v585 = vlaneseq
        %v586 = vshrl.u32 %v585, 7
        %v587 = vsub.s32 0, %v586
        %v588 = vrot.slane %v329, %v587
        %v589 = vlaneseq
        %v590 = vshrl.u32 %v589, 7
        %v591 = vsub.s32 0, %v590
        %v592 = vrot.slane %v330, %v591
        %v593 = vlaneseq
        %v594 = vshrl.u32 %v593, 7
        %v595 = vsub.s32 0, %v594
        %v596 = vrot.slane %v331, %v595
        %v597 = vlaneseq
        %v598 = vshrl.u32 %v597, 7
        %v599 = vsub.s32 0, %v598
        %v600 = vrot.slane %v332, %v599
        %601 = vset.pattern.permute.xlu0 0
        %602 = vperm.xlu0 %601, %v588
        %v603 = vpop.permute.xlu0 %602
        %605 = vset.pattern.permute.xlu0 0
        %606 = vperm.xlu0 %605, %v592
        %v607 = vpop.permute.xlu0 %606
        %609 = vset.pattern.permute.xlu0 0
        %610 = vperm.xlu0 %609, %v596
        %v611 = vpop.permute.xlu0 %610
        %613 = vset.pattern.permute.xlu0 0
        %614 = vperm.xlu0 %613, %v600
        %v615 = vpop.permute.xlu0 %614
        %v617 = vmul.f32 %v573, %v603
        %v618 = vmul.f32 %v574, %v603
        %v619 = vmul.f32 %v575, %v607
        %v620 = vmul.f32 %v576, %v607
        %v621 = vmul.f32 %v577, %v611
        %v622 = vmul.f32 %v578, %v611
        %v623 = vmul.f32 %v579, %v615
        %v624 = vmul.f32 %v580, %v615
        %v625 = vadd.f32 %v565, %v617
        %v626 = vadd.f32 %v566, %v618
        %v627 = vadd.f32 %v567, %v619
        %v628 = vadd.f32 %v568, %v620
        %v629 = vadd.f32 %v569, %v621
        %v630 = vadd.f32 %v570, %v622
        %v631 = vadd.f32 %v571, %v623
        %v632 = vadd.f32 %v572, %v624
        %v637 = vlaneseq
        %v638 = vshrl.u32 %v637, 7
        %v639 = vsub.s32 0, %v638
        %v640 = vrot.slane %v333, %v639
        %v641 = vlaneseq
        %v642 = vshrl.u32 %v641, 7
        %v643 = vsub.s32 0, %v642
        %v644 = vrot.slane %v334, %v643
        %v645 = vlaneseq
        %v646 = vshrl.u32 %v645, 7
        %v647 = vsub.s32 0, %v646
        %v648 = vrot.slane %v335, %v647
        %v649 = vlaneseq
        %v650 = vshrl.u32 %v649, 7
        %v651 = vsub.s32 0, %v650
        %v652 = vrot.slane %v336, %v651
        %653 = vset.pattern.permute.xlu0 0
        %654 = vperm.xlu0 %653, %v640
        %v655 = vpop.permute.xlu0 %654
        %657 = vset.pattern.permute.xlu0 0
        %658 = vperm.xlu0 %657, %v644
        %v659 = vpop.permute.xlu0 %658
        %661 = vset.pattern.permute.xlu0 0
        %662 = vperm.xlu0 %661, %v648
        %v663 = vpop.permute.xlu0 %662
        %665 = vset.pattern.permute.xlu0 0
        %666 = vperm.xlu0 %665, %v652
        %v667 = vpop.permute.xlu0 %666
        %v669 = vmul.f32 %v573, %v655
        %v670 = vmul.f32 %v574, %v655
        %v671 = vmul.f32 %v575, %v659
        %v672 = vmul.f32 %v576, %v659
        %v673 = vmul.f32 %v577, %v663
        %v674 = vmul.f32 %v578, %v663
        %v675 = vmul.f32 %v579, %v667
        %v676 = vmul.f32 %v580, %v667
        %685 = vrot.lane.b32.xlu0 %v669, 127
        %v686 = vpop.permute.xlu0 %685
        %687 = vrot.lane.b32.xlu0 %v670, 127
        %v688 = vpop.permute.xlu0 %687
        %689 = vrot.lane.b32.xlu0 %v671, 127
        %v690 = vpop.permute.xlu0 %689
        %691 = vrot.lane.b32.xlu0 %v672, 127
        %v692 = vpop.permute.xlu0 %691
        %693 = vrot.lane.b32.xlu0 %v673, 127
        %v694 = vpop.permute.xlu0 %693
        %695 = vrot.lane.b32.xlu0 %v674, 127
        %v696 = vpop.permute.xlu0 %695
        %697 = vrot.lane.b32.xlu0 %v675, 127
        %v698 = vpop.permute.xlu0 %697
        %699 = vrot.lane.b32.xlu0 %v676, 127
        %v700 = vpop.permute.xlu0 %699
        %v709 = vadd.f32 %v625, %v686
        %v710 = vadd.f32 %v626, %v688
        %v711 = vadd.f32 %v627, %v690
        %v712 = vadd.f32 %v628, %v692
        %v713 = vadd.f32 %v629, %v694
        %v714 = vadd.f32 %v630, %v696
        %v715 = vadd.f32 %v631, %v698
        %v716 = vadd.f32 %v632, %v700
        %v721 = vlaneseq
        %v722 = vshrl.u32 %v721, 7
        %v723 = vsub.s32 0, %v722
        %v724 = vrot.slane %v337, %v723
        %v725 = vlaneseq
        %v726 = vshrl.u32 %v725, 7
        %v727 = vsub.s32 0, %v726
        %v728 = vrot.slane %v338, %v727
        %v729 = vlaneseq
        %v730 = vshrl.u32 %v729, 7
        %v731 = vsub.s32 0, %v730
        %v732 = vrot.slane %v339, %v731
        %v733 = vlaneseq
        %v734 = vshrl.u32 %v733, 7
        %v735 = vsub.s32 0, %v734
        %v736 = vrot.slane %v340, %v735
        %737 = vset.pattern.permute.xlu0 0
        %738 = vperm.xlu0 %737, %v724
        %v739 = vpop.permute.xlu0 %738
        %741 = vset.pattern.permute.xlu0 0
        %742 = vperm.xlu0 %741, %v728
        %v743 = vpop.permute.xlu0 %742
        %745 = vset.pattern.permute.xlu0 0
        %746 = vperm.xlu0 %745, %v732
        %v747 = vpop.permute.xlu0 %746
        %749 = vset.pattern.permute.xlu0 0
        %750 = vperm.xlu0 %749, %v736
        %v751 = vpop.permute.xlu0 %750
        %v753 = vmul.f32 %v573, %v739
        %v754 = vmul.f32 %v574, %v739
        %v755 = vmul.f32 %v575, %v743
        %v756 = vmul.f32 %v576, %v743
        %v757 = vmul.f32 %v577, %v747
        %v758 = vmul.f32 %v578, %v747
        %v759 = vmul.f32 %v579, %v751
        %v760 = vmul.f32 %v580, %v751
        %769 = vrot.lane.b32.xlu0 %v753, 126
        %v770 = vpop.permute.xlu0 %769
        %771 = vrot.lane.b32.xlu0 %v754, 126
        %v772 = vpop.permute.xlu0 %771
        %773 = vrot.lane.b32.xlu0 %v755, 126
        %v774 = vpop.permute.xlu0 %773
        %775 = vrot.lane.b32.xlu0 %v756, 126
        %v776 = vpop.permute.xlu0 %775
        %777 = vrot.lane.b32.xlu0 %v757, 126
        %v778 = vpop.permute.xlu0 %777
        %779 = vrot.lane.b32.xlu0 %v758, 126
        %v780 = vpop.permute.xlu0 %779
        %781 = vrot.lane.b32.xlu0 %v759, 126
        %v782 = vpop.permute.xlu0 %781
        %783 = vrot.lane.b32.xlu0 %v760, 126
        %v784 = vpop.permute.xlu0 %783
        %v793 = vadd.f32 %v709, %v770
        %v794 = vadd.f32 %v710, %v772
        %v795 = vadd.f32 %v711, %v774
        %v796 = vadd.f32 %v712, %v776
        %v797 = vadd.f32 %v713, %v778
        %v798 = vadd.f32 %v714, %v780
        %v799 = vadd.f32 %v715, %v782
        %v800 = vadd.f32 %v716, %v784
        %v801 = vld [vmem:[#allocation2 + $0x2] sm:$0xff]
        %v802 = vld [vmem:[#allocation2 + $0xa] sm:$0xff]
        %v803 = vld [vmem:[#allocation2 + $0x1a] sm:$0xff]
        %v804 = vld [vmem:[#allocation2 + $0x22] sm:$0xff]
        %v805 = vld [vmem:[#allocation2 + $0x32] sm:$0xff]
        %v806 = vld [vmem:[#allocation2 + $0x3a] sm:$0xff]
        %v807 = vld [vmem:[#allocation2 + $0x4a] sm:$0xff]
        %v808 = vld [vmem:[#allocation2 + $0x52] sm:$0xff]
        %v813 = vlaneseq
        %v814 = vshrl.u32 %v813, 7
        %v815 = vsub.s32 0, %v814
        %v816 = vrot.slane %v341, %v815
        %v817 = vlaneseq
        %v818 = vshrl.u32 %v817, 7
        %v819 = vsub.s32 0, %v818
        %v820 = vrot.slane %v342, %v819
        %v821 = vlaneseq
        %v822 = vshrl.u32 %v821, 7
        %v823 = vsub.s32 0, %v822
        %v824 = vrot.slane %v343, %v823
        %v825 = vlaneseq
        %v826 = vshrl.u32 %v825, 7
        %v827 = vsub.s32 0, %v826
        %v828 = vrot.slane %v344, %v827
        %829 = vset.pattern.permute.xlu0 0
        %830 = vperm.xlu0 %829, %v816
        %v831 = vpop.permute.xlu0 %830
        %833 = vset.pattern.permute.xlu0 0
        %834 = vperm.xlu0 %833, %v820
        %v835 = vpop.permute.xlu0 %834
        %837 = vset.pattern.permute.xlu0 0
        %838 = vperm.xlu0 %837, %v824
        %v839 = vpop.permute.xlu0 %838
        %841 = vset.pattern.permute.xlu0 0
        %842 = vperm.xlu0 %841, %v828
        %v843 = vpop.permute.xlu0 %842
        %v845 = vmul.f32 %v801, %v831
        %v846 = vmul.f32 %v802, %v831
        %v847 = vmul.f32 %v803, %v835
        %v848 = vmul.f32 %v804, %v835
        %v849 = vmul.f32 %v805, %v839
        %v850 = vmul.f32 %v806, %v839
        %v851 = vmul.f32 %v807, %v843
        %v852 = vmul.f32 %v808, %v843
        %v853 = vadd.f32 %v793, %v845
        %v854 = vadd.f32 %v794, %v846
        %v855 = vadd.f32 %v795, %v847
        %v856 = vadd.f32 %v796, %v848
        %v857 = vadd.f32 %v797, %v849
        %v858 = vadd.f32 %v798, %v850
        %v859 = vadd.f32 %v799, %v851
        %v860 = vadd.f32 %v800, %v852
        %v865 = vlaneseq
        %v866 = vshrl.u32 %v865, 7
        %v867 = vsub.s32 0, %v866
        %v868 = vrot.slane %v345, %v867
        %v869 = vlaneseq
        %v870 = vshrl.u32 %v869, 7
        %v871 = vsub.s32 0, %v870
        %v872 = vrot.slane %v346, %v871
        %v873 = vlaneseq
        %v874 = vshrl.u32 %v873, 7
        %v875 = vsub.s32 0, %v874
        %v876 = vrot.slane %v347, %v875
        %v877 = vlaneseq
        %v878 = vshrl.u32 %v877, 7
        %v879 = vsub.s32 0, %v878
        %v880 = vrot.slane %v348, %v879
        %881 = vset.pattern.permute.xlu0 0
        %882 = vperm.xlu0 %881, %v868
        %v883 = vpop.permute.xlu0 %882
        %885 = vset.pattern.permute.xlu0 0
        %886 = vperm.xlu0 %885, %v872
        %v887 = vpop.permute.xlu0 %886
        %889 = vset.pattern.permute.xlu0 0
        %890 = vperm.xlu0 %889, %v876
        %v891 = vpop.permute.xlu0 %890
        %893 = vset.pattern.permute.xlu0 0
        %894 = vperm.xlu0 %893, %v880
        %v895 = vpop.permute.xlu0 %894
        %v897 = vmul.f32 %v801, %v883
        %v898 = vmul.f32 %v802, %v883
        %v899 = vmul.f32 %v803, %v887
        %v900 = vmul.f32 %v804, %v887
        %v901 = vmul.f32 %v805, %v891
        %v902 = vmul.f32 %v806, %v891
        %v903 = vmul.f32 %v807, %v895
        %v904 = vmul.f32 %v808, %v895
        %913 = vrot.lane.b32.xlu0 %v897, 127
        %v914 = vpop.permute.xlu0 %913
        %915 = vrot.lane.b32.xlu0 %v898, 127
        %v916 = vpop.permute.xlu0 %915
        %917 = vrot.lane.b32.xlu0 %v899, 127
        %v918 = vpop.permute.xlu0 %917
        %919 = vrot.lane.b32.xlu0 %v900, 127
        %v920 = vpop.permute.xlu0 %919
        %921 = vrot.lane.b32.xlu0 %v901, 127
        %v922 = vpop.permute.xlu0 %921
        %923 = vrot.lane.b32.xlu0 %v902, 127
        %v924 = vpop.permute.xlu0 %923
        %925 = vrot.lane.b32.xlu0 %v903, 127
        %v926 = vpop.permute.xlu0 %925
        %927 = vrot.lane.b32.xlu0 %v904, 127
        %v928 = vpop.permute.xlu0 %927
        %v937 = vadd.f32 %v853, %v914
        %v938 = vadd.f32 %v854, %v916
        %v939 = vadd.f32 %v855, %v918
        %v940 = vadd.f32 %v856, %v920
        %v941 = vadd.f32 %v857, %v922
        %v942 = vadd.f32 %v858, %v924
        %v943 = vadd.f32 %v859, %v926
        %v944 = vadd.f32 %v860, %v928
        %v949 = vlaneseq
        %v950 = vshrl.u32 %v949, 7
        %v951 = vsub.s32 0, %v950
        %v952 = vrot.slane %v349, %v951
        %v953 = vlaneseq
        %v954 = vshrl.u32 %v953, 7
        %v955 = vsub.s32 0, %v954
        %v956 = vrot.slane %v350, %v955
        %v957 = vlaneseq
        %v958 = vshrl.u32 %v957, 7
        %v959 = vsub.s32 0, %v958
        %v960 = vrot.slane %v351, %v959
        %v961 = vlaneseq
        %v962 = vshrl.u32 %v961, 7
        %v963 = vsub.s32 0, %v962
        %v964 = vrot.slane %v352, %v963
        %965 = vset.pattern.permute.xlu0 0
        %966 = vperm.xlu0 %965, %v952
        %v967 = vpop.permute.xlu0 %966
        %969 = vset.pattern.permute.xlu0 0
        %970 = vperm.xlu0 %969, %v956
        %v971 = vpop.permute.xlu0 %970
        %973 = vset.pattern.permute.xlu0 0
        %974 = vperm.xlu0 %973, %v960
        %v975 = vpop.permute.xlu0 %974
        %977 = vset.pattern.permute.xlu0 0
        %978 = vperm.xlu0 %977, %v964
        %v979 = vpop.permute.xlu0 %978
        %v981 = vmul.f32 %v801, %v967
        %v982 = vmul.f32 %v802, %v967
        %v983 = vmul.f32 %v803, %v971
        %v984 = vmul.f32 %v804, %v971
        %v985 = vmul.f32 %v805, %v975
        %v986 = vmul.f32 %v806, %v975
        %v987 = vmul.f32 %v807, %v979
        %v988 = vmul.f32 %v808, %v979
        %997 = vrot.lane.b32.xlu0 %v981, 126
        %v998 = vpop.permute.xlu0 %997
        %999 = vrot.lane.b32.xlu0 %v982, 126
        %v1000 = vpop.permute.xlu0 %999
        %1001 = vrot.lane.b32.xlu0 %v983, 126
        %v1002 = vpop.permute.xlu0 %1001
        %1003 = vrot.lane.b32.xlu0 %v984, 126
        %v1004 = vpop.permute.xlu0 %1003
        %1005 = vrot.lane.b32.xlu0 %v985, 126
        %v1006 = vpop.permute.xlu0 %1005
        %1007 = vrot.lane.b32.xlu0 %v986, 126
        %v1008 = vpop.permute.xlu0 %1007
        %1009 = vrot.lane.b32.xlu0 %v987, 126
        %v1010 = vpop.permute.xlu0 %1009
        %1011 = vrot.lane.b32.xlu0 %v988, 126
        %v1012 = vpop.permute.xlu0 %1011
        %v1021 = vadd.f32 %v937, %v998
        %v1022 = vadd.f32 %v938, %v1000
        %v1023 = vadd.f32 %v939, %v1002
        %v1024 = vadd.f32 %v940, %v1004
        %v1025 = vadd.f32 %v941, %v1006
        %v1026 = vadd.f32 %v942, %v1008
        %v1027 = vadd.f32 %v943, %v1010
        %v1028 = vadd.f32 %v944, %v1012
        %v1029 = vld [vmem:[%s2] sm:$0x1]
        %v1030 = vld [vmem:[%s2 + $0x1] sm:$0x1]
        %v1031 = vld [vmem:[%s2 + $0x2] sm:$0x1]
        %v1032 = vld [vmem:[%s2 + $0x3] sm:$0x1]
        %v1033 = vld [vmem:[%s2 + $0x4] sm:$0x1]
        %v1034 = vld [vmem:[%s2 + $0x5] sm:$0x1]
        %v1035 = vld [vmem:[%s2 + $0x6] sm:$0x1]
        %v1036 = vld [vmem:[%s2 + $0x7] sm:$0x1]
        %v1037 = vld [vmem:[%s2 + $0x8] sm:$0x1]
        %v1038 = vld [vmem:[%s2 + $0x9] sm:$0x1]
        %v1039 = vld [vmem:[%s2 + $0xa] sm:$0x1]
        %v1040 = vld [vmem:[%s2 + $0xb] sm:$0x1]
        %v1041 = vld [vmem:[%s2 + $0xc] sm:$0x1]
        %v1042 = vld [vmem:[%s2 + $0xd] sm:$0x1]
        %v1043 = vld [vmem:[%s2 + $0xe] sm:$0x1]
        %v1044 = vld [vmem:[%s2 + $0xf] sm:$0x1]
        %v1045 = vld [vmem:[%s2 + $0x10] sm:$0x1]
        %v1046 = vld [vmem:[%s2 + $0x11] sm:$0x1]
        %v1047 = vld [vmem:[%s2 + $0x12] sm:$0x1]
        %v1048 = vld [vmem:[%s2 + $0x13] sm:$0x1]
        %v1049 = vld [vmem:[%s2 + $0x14] sm:$0x1]
        %v1050 = vld [vmem:[%s2 + $0x15] sm:$0x1]
        %v1051 = vld [vmem:[%s2 + $0x16] sm:$0x1]
        %v1052 = vld [vmem:[%s2 + $0x17] sm:$0x1]
        %v1053 = vld [vmem:[%s2 + $0x18] sm:$0x1]
        %v1054 = vld [vmem:[%s2 + $0x19] sm:$0x1]
        %v1055 = vld [vmem:[%s2 + $0x1a] sm:$0x1]
        %v1056 = vld [vmem:[%s2 + $0x1b] sm:$0x1]
        %v1057 = vld [vmem:[%s2 + $0x1c] sm:$0x1]
        %v1058 = vld [vmem:[%s2 + $0x1d] sm:$0x1]
        %v1059 = vld [vmem:[%s2 + $0x1e] sm:$0x1]
        %v1060 = vld [vmem:[%s2 + $0x1f] sm:$0x1]
        %v1069 = vlaneseq
        %v1070 = vshrl.u32 %v1069, 7
        %v1071 = vsub.s32 0, %v1070
        %v1072 = vrot.slane %v1029, %v1071
        %v1073 = vlaneseq
        %v1074 = vshrl.u32 %v1073, 7
        %v1075 = vsub.s32 0, %v1074
        %v1076 = vrot.slane %v1030, %v1075
        %v1077 = vlaneseq
        %v1078 = vshrl.u32 %v1077, 7
        %v1079 = vsub.s32 0, %v1078
        %v1080 = vrot.slane %v1031, %v1079
        %v1081 = vlaneseq
        %v1082 = vshrl.u32 %v1081, 7
        %v1083 = vsub.s32 0, %v1082
        %v1084 = vrot.slane %v1032, %v1083
        %v1085 = vlaneseq
        %v1086 = vshrl.u32 %v1085, 7
        %v1087 = vsub.s32 0, %v1086
        %v1088 = vrot.slane %v1033, %v1087
        %v1089 = vlaneseq
        %v1090 = vshrl.u32 %v1089, 7
        %v1091 = vsub.s32 0, %v1090
        %v1092 = vrot.slane %v1034, %v1091
        %v1093 = vlaneseq
        %v1094 = vshrl.u32 %v1093, 7
        %v1095 = vsub.s32 0, %v1094
        %v1096 = vrot.slane %v1035, %v1095
        %v1097 = vlaneseq
        %v1098 = vshrl.u32 %v1097, 7
        %v1099 = vsub.s32 0, %v1098
        %v1100 = vrot.slane %v1036, %v1099
        %1101 = vset.pattern.permute.xlu0 0
        %1102 = vperm.xlu0 %1101, %v1072
        %v1103 = vpop.permute.xlu0 %1102
        %1105 = vset.pattern.permute.xlu0 0
        %1106 = vperm.xlu0 %1105, %v1076
        %v1107 = vpop.permute.xlu0 %1106
        %1109 = vset.pattern.permute.xlu0 0
        %1110 = vperm.xlu0 %1109, %v1080
        %v1111 = vpop.permute.xlu0 %1110
        %1113 = vset.pattern.permute.xlu0 0
        %1114 = vperm.xlu0 %1113, %v1084
        %v1115 = vpop.permute.xlu0 %1114
        %1117 = vset.pattern.permute.xlu0 0
        %1118 = vperm.xlu0 %1117, %v1088
        %v1119 = vpop.permute.xlu0 %1118
        %1121 = vset.pattern.permute.xlu0 0
        %1122 = vperm.xlu0 %1121, %v1092
        %v1123 = vpop.permute.xlu0 %1122
        %1125 = vset.pattern.permute.xlu0 0
        %1126 = vperm.xlu0 %1125, %v1096
        %v1127 = vpop.permute.xlu0 %1126
        %1129 = vset.pattern.permute.xlu0 0
        %1130 = vperm.xlu0 %1129, %v1100
        %v1131 = vpop.permute.xlu0 %1130
        %v1133 = vmul.f32 %v1021, %v1103
        %v1134 = vmul.f32 %v1022, %v1103
        %v1135 = vmul.f32 %v1021, %v1107
        %v1136 = vmul.f32 %v1022, %v1107
        %v1137 = vmul.f32 %v1021, %v1111
        %v1138 = vmul.f32 %v1022, %v1111
        %v1139 = vmul.f32 %v1021, %v1115
        %v1140 = vmul.f32 %v1022, %v1115
        %v1141 = vmul.f32 %v1021, %v1119
        %v1142 = vmul.f32 %v1022, %v1119
        %v1143 = vmul.f32 %v1021, %v1123
        %v1144 = vmul.f32 %v1022, %v1123
        %v1145 = vmul.f32 %v1021, %v1127
        %v1146 = vmul.f32 %v1022, %v1127
        %v1147 = vmul.f32 %v1021, %v1131
        %v1148 = vmul.f32 %v1022, %v1131
        %v1157 = vlaneseq
        %v1158 = vshrl.u32 %v1157, 7
        %v1159 = vsub.s32 0, %v1158
        %v1160 = vrot.slane %v1037, %v1159
        %v1161 = vlaneseq
        %v1162 = vshrl.u32 %v1161, 7
        %v1163 = vsub.s32 0, %v1162
        %v1164 = vrot.slane %v1038, %v1163
        %v1165 = vlaneseq
        %v1166 = vshrl.u32 %v1165, 7
        %v1167 = vsub.s32 0, %v1166
        %v1168 = vrot.slane %v1039, %v1167
        %v1169 = vlaneseq
        %v1170 = vshrl.u32 %v1169, 7
        %v1171 = vsub.s32 0, %v1170
        %v1172 = vrot.slane %v1040, %v1171
        %v1173 = vlaneseq
        %v1174 = vshrl.u32 %v1173, 7
        %v1175 = vsub.s32 0, %v1174
        %v1176 = vrot.slane %v1041, %v1175
        %v1177 = vlaneseq
        %v1178 = vshrl.u32 %v1177, 7
        %v1179 = vsub.s32 0, %v1178
        %v1180 = vrot.slane %v1042, %v1179
        %v1181 = vlaneseq
        %v1182 = vshrl.u32 %v1181, 7
        %v1183 = vsub.s32 0, %v1182
        %v1184 = vrot.slane %v1043, %v1183
        %v1185 = vlaneseq
        %v1186 = vshrl.u32 %v1185, 7
        %v1187 = vsub.s32 0, %v1186
        %v1188 = vrot.slane %v1044, %v1187
        %1189 = vset.pattern.permute.xlu0 0
        %1190 = vperm.xlu0 %1189, %v1160
        %v1191 = vpop.permute.xlu0 %1190
        %1193 = vset.pattern.permute.xlu0 0
        %1194 = vperm.xlu0 %1193, %v1164
        %v1195 = vpop.permute.xlu0 %1194
        %1197 = vset.pattern.permute.xlu0 0
        %1198 = vperm.xlu0 %1197, %v1168
        %v1199 = vpop.permute.xlu0 %1198
        %1201 = vset.pattern.permute.xlu0 0
        %1202 = vperm.xlu0 %1201, %v1172
        %v1203 = vpop.permute.xlu0 %1202
        %1205 = vset.pattern.permute.xlu0 0
        %1206 = vperm.xlu0 %1205, %v1176
        %v1207 = vpop.permute.xlu0 %1206
        %1209 = vset.pattern.permute.xlu0 0
        %1210 = vperm.xlu0 %1209, %v1180
        %v1211 = vpop.permute.xlu0 %1210
        %1213 = vset.pattern.permute.xlu0 0
        %1214 = vperm.xlu0 %1213, %v1184
        %v1215 = vpop.permute.xlu0 %1214
        %1217 = vset.pattern.permute.xlu0 0
        %1218 = vperm.xlu0 %1217, %v1188
        %v1219 = vpop.permute.xlu0 %1218
        %v1221 = vmul.f32 %v1023, %v1191
        %v1222 = vmul.f32 %v1024, %v1191
        %v1223 = vmul.f32 %v1023, %v1195
        %v1224 = vmul.f32 %v1024, %v1195
        %v1225 = vmul.f32 %v1023, %v1199
        %v1226 = vmul.f32 %v1024, %v1199
        %v1227 = vmul.f32 %v1023, %v1203
        %v1228 = vmul.f32 %v1024, %v1203
        %v1229 = vmul.f32 %v1023, %v1207
        %v1230 = vmul.f32 %v1024, %v1207
        %v1231 = vmul.f32 %v1023, %v1211
        %v1232 = vmul.f32 %v1024, %v1211
        %v1233 = vmul.f32 %v1023, %v1215
        %v1234 = vmul.f32 %v1024, %v1215
        %v1235 = vmul.f32 %v1023, %v1219
        %v1236 = vmul.f32 %v1024, %v1219
        %v1237 = vadd.f32 %v1133, %v1221
        %v1238 = vadd.f32 %v1134, %v1222
        %v1239 = vadd.f32 %v1135, %v1223
        %v1240 = vadd.f32 %v1136, %v1224
        %v1241 = vadd.f32 %v1137, %v1225
        %v1242 = vadd.f32 %v1138, %v1226
        %v1243 = vadd.f32 %v1139, %v1227
        %v1244 = vadd.f32 %v1140, %v1228
        %v1245 = vadd.f32 %v1141, %v1229
        %v1246 = vadd.f32 %v1142, %v1230
        %v1247 = vadd.f32 %v1143, %v1231
        %v1248 = vadd.f32 %v1144, %v1232
        %v1249 = vadd.f32 %v1145, %v1233
        %v1250 = vadd.f32 %v1146, %v1234
        %v1251 = vadd.f32 %v1147, %v1235
        %v1252 = vadd.f32 %v1148, %v1236
        %v1261 = vlaneseq
        %v1262 = vshrl.u32 %v1261, 7
        %v1263 = vsub.s32 0, %v1262
        %v1264 = vrot.slane %v1045, %v1263
        %v1265 = vlaneseq
        %v1266 = vshrl.u32 %v1265, 7
        %v1267 = vsub.s32 0, %v1266
        %v1268 = vrot.slane %v1046, %v1267
        %v1269 = vlaneseq
        %v1270 = vshrl.u32 %v1269, 7
        %v1271 = vsub.s32 0, %v1270
        %v1272 = vrot.slane %v1047, %v1271
        %v1273 = vlaneseq
        %v1274 = vshrl.u32 %v1273, 7
        %v1275 = vsub.s32 0, %v1274
        %v1276 = vrot.slane %v1048, %v1275
        %v1277 = vlaneseq
        %v1278 = vshrl.u32 %v1277, 7
        %v1279 = vsub.s32 0, %v1278
        %v1280 = vrot.slane %v1049, %v1279
        %v1281 = vlaneseq
        %v1282 = vshrl.u32 %v1281, 7
        %v1283 = vsub.s32 0, %v1282
        %v1284 = vrot.slane %v1050, %v1283
        %v1285 = vlaneseq
        %v1286 = vshrl.u32 %v1285, 7
        %v1287 = vsub.s32 0, %v1286
        %v1288 = vrot.slane %v1051, %v1287
        %v1289 = vlaneseq
        %v1290 = vshrl.u32 %v1289, 7
        %v1291 = vsub.s32 0, %v1290
        %v1292 = vrot.slane %v1052, %v1291
        %1293 = vset.pattern.permute.xlu0 0
        %1294 = vperm.xlu0 %1293, %v1264
        %v1295 = vpop.permute.xlu0 %1294
        %1297 = vset.pattern.permute.xlu0 0
        %1298 = vperm.xlu0 %1297, %v1268
        %v1299 = vpop.permute.xlu0 %1298
        %1301 = vset.pattern.permute.xlu0 0
        %1302 = vperm.xlu0 %1301, %v1272
        %v1303 = vpop.permute.xlu0 %1302
        %1305 = vset.pattern.permute.xlu0 0
        %1306 = vperm.xlu0 %1305, %v1276
        %v1307 = vpop.permute.xlu0 %1306
        %1309 = vset.pattern.permute.xlu0 0
        %1310 = vperm.xlu0 %1309, %v1280
        %v1311 = vpop.permute.xlu0 %1310
        %1313 = vset.pattern.permute.xlu0 0
        %1314 = vperm.xlu0 %1313, %v1284
        %v1315 = vpop.permute.xlu0 %1314
        %1317 = vset.pattern.permute.xlu0 0
        %1318 = vperm.xlu0 %1317, %v1288
        %v1319 = vpop.permute.xlu0 %1318
        %1321 = vset.pattern.permute.xlu0 0
        %1322 = vperm.xlu0 %1321, %v1292
        %v1323 = vpop.permute.xlu0 %1322
        %v1325 = vmul.f32 %v1025, %v1295
        %v1326 = vmul.f32 %v1026, %v1295
        %v1327 = vmul.f32 %v1025, %v1299
        %v1328 = vmul.f32 %v1026, %v1299
        %v1329 = vmul.f32 %v1025, %v1303
        %v1330 = vmul.f32 %v1026, %v1303
        %v1331 = vmul.f32 %v1025, %v1307
        %v1332 = vmul.f32 %v1026, %v1307
        %v1333 = vmul.f32 %v1025, %v1311
        %v1334 = vmul.f32 %v1026, %v1311
        %v1335 = vmul.f32 %v1025, %v1315
        %v1336 = vmul.f32 %v1026, %v1315
        %v1337 = vmul.f32 %v1025, %v1319
        %v1338 = vmul.f32 %v1026, %v1319
        %v1339 = vmul.f32 %v1025, %v1323
        %v1340 = vmul.f32 %v1026, %v1323
        %v1341 = vadd.f32 %v1237, %v1325
        %v1342 = vadd.f32 %v1238, %v1326
        %v1343 = vadd.f32 %v1239, %v1327
        %v1344 = vadd.f32 %v1240, %v1328
        %v1345 = vadd.f32 %v1241, %v1329
        %v1346 = vadd.f32 %v1242, %v1330
        %v1347 = vadd.f32 %v1243, %v1331
        %v1348 = vadd.f32 %v1244, %v1332
        %v1349 = vadd.f32 %v1245, %v1333
        %v1350 = vadd.f32 %v1246, %v1334
        %v1351 = vadd.f32 %v1247, %v1335
        %v1352 = vadd.f32 %v1248, %v1336
        %v1353 = vadd.f32 %v1249, %v1337
        %v1354 = vadd.f32 %v1250, %v1338
        %v1355 = vadd.f32 %v1251, %v1339
        %v1356 = vadd.f32 %v1252, %v1340
        %v1365 = vlaneseq
        %v1366 = vshrl.u32 %v1365, 7
        %v1367 = vsub.s32 0, %v1366
        %v1368 = vrot.slane %v1053, %v1367
        %v1369 = vlaneseq
        %v1370 = vshrl.u32 %v1369, 7
        %v1371 = vsub.s32 0, %v1370
        %v1372 = vrot.slane %v1054, %v1371
        %v1373 = vlaneseq
        %v1374 = vshrl.u32 %v1373, 7
        %v1375 = vsub.s32 0, %v1374
        %v1376 = vrot.slane %v1055, %v1375
        %v1377 = vlaneseq
        %v1378 = vshrl.u32 %v1377, 7
        %v1379 = vsub.s32 0, %v1378
        %v1380 = vrot.slane %v1056, %v1379
        %v1381 = vlaneseq
        %v1382 = vshrl.u32 %v1381, 7
        %v1383 = vsub.s32 0, %v1382
        %v1384 = vrot.slane %v1057, %v1383
        %v1385 = vlaneseq
        %v1386 = vshrl.u32 %v1385, 7
        %v1387 = vsub.s32 0, %v1386
        %v1388 = vrot.slane %v1058, %v1387
        %v1389 = vlaneseq
        %v1390 = vshrl.u32 %v1389, 7
        %v1391 = vsub.s32 0, %v1390
        %v1392 = vrot.slane %v1059, %v1391
        %v1393 = vlaneseq
        %v1394 = vshrl.u32 %v1393, 7
        %v1395 = vsub.s32 0, %v1394
        %v1396 = vrot.slane %v1060, %v1395
        %1397 = vset.pattern.permute.xlu0 0
        %1398 = vperm.xlu0 %1397, %v1368
        %v1399 = vpop.permute.xlu0 %1398
        %1401 = vset.pattern.permute.xlu0 0
        %1402 = vperm.xlu0 %1401, %v1372
        %v1403 = vpop.permute.xlu0 %1402
        %1405 = vset.pattern.permute.xlu0 0
        %1406 = vperm.xlu0 %1405, %v1376
        %v1407 = vpop.permute.xlu0 %1406
        %1409 = vset.pattern.permute.xlu0 0
        %1410 = vperm.xlu0 %1409, %v1380
        %v1411 = vpop.permute.xlu0 %1410
        %1413 = vset.pattern.permute.xlu0 0
        %1414 = vperm.xlu0 %1413, %v1384
        %v1415 = vpop.permute.xlu0 %1414
        %1417 = vset.pattern.permute.xlu0 0
        %1418 = vperm.xlu0 %1417, %v1388
        %v1419 = vpop.permute.xlu0 %1418
        %1421 = vset.pattern.permute.xlu0 0
        %1422 = vperm.xlu0 %1421, %v1392
        %v1423 = vpop.permute.xlu0 %1422
        %1425 = vset.pattern.permute.xlu0 0
        %1426 = vperm.xlu0 %1425, %v1396
        %v1427 = vpop.permute.xlu0 %1426
        %v1429 = vmul.f32 %v1027, %v1399
        %v1430 = vmul.f32 %v1028, %v1399
        %v1431 = vmul.f32 %v1027, %v1403
        %v1432 = vmul.f32 %v1028, %v1403
        %v1433 = vmul.f32 %v1027, %v1407
        %v1434 = vmul.f32 %v1028, %v1407
        %v1435 = vmul.f32 %v1027, %v1411
        %v1436 = vmul.f32 %v1028, %v1411
        %v1437 = vmul.f32 %v1027, %v1415
        %v1438 = vmul.f32 %v1028, %v1415
        %v1439 = vmul.f32 %v1027, %v1419
        %v1440 = vmul.f32 %v1028, %v1419
        %v1441 = vmul.f32 %v1027, %v1423
        %v1442 = vmul.f32 %v1028, %v1423
        %v1443 = vmul.f32 %v1027, %v1427
        %v1444 = vmul.f32 %v1028, %v1427
        %v1445 = vadd.f32 %v1341, %v1429
        %v1446 = vadd.f32 %v1342, %v1430
        %v1447 = vadd.f32 %v1343, %v1431
        %v1448 = vadd.f32 %v1344, %v1432
        %v1449 = vadd.f32 %v1345, %v1433
        %v1450 = vadd.f32 %v1346, %v1434
        %v1451 = vadd.f32 %v1347, %v1435
        %v1452 = vadd.f32 %v1348, %v1436
        %v1453 = vadd.f32 %v1349, %v1437
        %v1454 = vadd.f32 %v1350, %v1438
        %v1455 = vadd.f32 %v1351, %v1439
        %v1456 = vadd.f32 %v1352, %v1440
        %v1457 = vadd.f32 %v1353, %v1441
        %v1458 = vadd.f32 %v1354, %v1442
        %v1459 = vadd.f32 %v1355, %v1443
        %v1460 = vadd.f32 %v1356, %v1444
        %v1461 = vld [vmem:[%s3] sm:$0x1]
        %v1462 = vld [vmem:[%s3 + $0x1] sm:$0x1]
        %v1463 = vld [vmem:[%s3 + $0x2] sm:$0x1]
        %v1464 = vld [vmem:[%s3 + $0x3] sm:$0x1]
        %v1465 = vld [vmem:[%s3 + $0x4] sm:$0x1]
        %v1466 = vld [vmem:[%s3 + $0x5] sm:$0x1]
        %v1467 = vld [vmem:[%s3 + $0x6] sm:$0x1]
        %v1468 = vld [vmem:[%s3 + $0x7] sm:$0x1]
        %v1477 = vlaneseq
        %v1478 = vshrl.u32 %v1477, 7
        %v1479 = vsub.s32 0, %v1478
        %v1480 = vrot.slane %v1461, %v1479
        %v1481 = vlaneseq
        %v1482 = vshrl.u32 %v1481, 7
        %v1483 = vsub.s32 0, %v1482
        %v1484 = vrot.slane %v1462, %v1483
        %v1485 = vlaneseq
        %v1486 = vshrl.u32 %v1485, 7
        %v1487 = vsub.s32 0, %v1486
        %v1488 = vrot.slane %v1463, %v1487
        %v1489 = vlaneseq
        %v1490 = vshrl.u32 %v1489, 7
        %v1491 = vsub.s32 0, %v1490
        %v1492 = vrot.slane %v1464, %v1491
        %v1493 = vlaneseq
        %v1494 = vshrl.u32 %v1493, 7
        %v1495 = vsub.s32 0, %v1494
        %v1496 = vrot.slane %v1465, %v1495
        %v1497 = vlaneseq
        %v1498 = vshrl.u32 %v1497, 7
        %v1499 = vsub.s32 0, %v1498
        %v1500 = vrot.slane %v1466, %v1499
        %v1501 = vlaneseq
        %v1502 = vshrl.u32 %v1501, 7
        %v1503 = vsub.s32 0, %v1502
        %v1504 = vrot.slane %v1467, %v1503
        %v1505 = vlaneseq
        %v1506 = vshrl.u32 %v1505, 7
        %v1507 = vsub.s32 0, %v1506
        %v1508 = vrot.slane %v1468, %v1507
        %1509 = vset.pattern.permute.xlu0 0
        %1510 = vperm.xlu0 %1509, %v1480
        %v1511 = vpop.permute.xlu0 %1510
        %1513 = vset.pattern.permute.xlu0 0
        %1514 = vperm.xlu0 %1513, %v1484
        %v1515 = vpop.permute.xlu0 %1514
        %1517 = vset.pattern.permute.xlu0 0
        %1518 = vperm.xlu0 %1517, %v1488
        %v1519 = vpop.permute.xlu0 %1518
        %1521 = vset.pattern.permute.xlu0 0
        %1522 = vperm.xlu0 %1521, %v1492
        %v1523 = vpop.permute.xlu0 %1522
        %1525 = vset.pattern.permute.xlu0 0
        %1526 = vperm.xlu0 %1525, %v1496
        %v1527 = vpop.permute.xlu0 %1526
        %1529 = vset.pattern.permute.xlu0 0
        %1530 = vperm.xlu0 %1529, %v1500
        %v1531 = vpop.permute.xlu0 %1530
        %1533 = vset.pattern.permute.xlu0 0
        %1534 = vperm.xlu0 %1533, %v1504
        %v1535 = vpop.permute.xlu0 %1534
        %1537 = vset.pattern.permute.xlu0 0
        %1538 = vperm.xlu0 %1537, %v1508
        %v1539 = vpop.permute.xlu0 %1538
        %v1541 = vadd.f32 %v1445, %v1511
        %v1542 = vadd.f32 %v1446, %v1511
        %v1543 = vadd.f32 %v1447, %v1515
        %v1544 = vadd.f32 %v1448, %v1515
        %v1545 = vadd.f32 %v1449, %v1519
        %v1546 = vadd.f32 %v1450, %v1519
        %v1547 = vadd.f32 %v1451, %v1523
        %v1548 = vadd.f32 %v1452, %v1523
        %v1549 = vadd.f32 %v1453, %v1527
        %v1550 = vadd.f32 %v1454, %v1527
        %v1551 = vadd.f32 %v1455, %v1531
        %v1552 = vadd.f32 %v1456, %v1531
        %v1553 = vadd.f32 %v1457, %v1535
        %v1554 = vadd.f32 %v1458, %v1535
        %v1555 = vadd.f32 %v1459, %v1539
        %v1556 = vadd.f32 %v1460, %v1539
        %v1557 = vxor.u32 %v1541, 2147483648
        %v1558 = vxor.u32 %v1542, 2147483648
        %v1559 = vxor.u32 %v1543, 2147483648
        %v1560 = vxor.u32 %v1544, 2147483648
        %v1561 = vxor.u32 %v1545, 2147483648
        %v1562 = vxor.u32 %v1546, 2147483648
        %v1563 = vxor.u32 %v1547, 2147483648
        %v1564 = vxor.u32 %v1548, 2147483648
        %v1565 = vxor.u32 %v1549, 2147483648
        %v1566 = vxor.u32 %v1550, 2147483648
        %v1567 = vxor.u32 %v1551, 2147483648
        %v1568 = vxor.u32 %v1552, 2147483648
        %v1569 = vxor.u32 %v1553, 2147483648
        %v1570 = vxor.u32 %v1554, 2147483648
        %v1571 = vxor.u32 %v1555, 2147483648
        %v1572 = vxor.u32 %v1556, 2147483648
        %v1573 = vmul.f32 %v1557, 1.442695
        %v1574 = vpow.pop %v1573
        %v1575 = vmul.f32 %v1558, 1.442695
        %v1576 = vpow.pop %v1575
        %v1577 = vmul.f32 %v1559, 1.442695
        %v1578 = vpow.pop %v1577
        %v1579 = vmul.f32 %v1560, 1.442695
        %v1580 = vpow.pop %v1579
        %v1581 = vmul.f32 %v1561, 1.442695
        %v1582 = vpow.pop %v1581
        %v1583 = vmul.f32 %v1562, 1.442695
        %v1584 = vpow.pop %v1583
        %v1585 = vmul.f32 %v1563, 1.442695
        %v1586 = vpow.pop %v1585
        %v1587 = vmul.f32 %v1564, 1.442695
        %v1588 = vpow.pop %v1587
        %v1589 = vmul.f32 %v1565, 1.442695
        %v1590 = vpow.pop %v1589
        %v1591 = vmul.f32 %v1566, 1.442695
        %v1592 = vpow.pop %v1591
        %v1593 = vmul.f32 %v1567, 1.442695
        %v1594 = vpow.pop %v1593
        %v1595 = vmul.f32 %v1568, 1.442695
        %v1596 = vpow.pop %v1595
        %v1597 = vmul.f32 %v1569, 1.442695
        %v1598 = vpow.pop %v1597
        %v1599 = vmul.f32 %v1570, 1.442695
        %v1600 = vpow.pop %v1599
        %v1601 = vmul.f32 %v1571, 1.442695
        %v1602 = vpow.pop %v1601
        %v1603 = vmul.f32 %v1572, 1.442695
        %v1604 = vpow.pop %v1603
        %v1605 = vadd.f32 %v1574, 1.0
        %v1606 = vadd.f32 %v1576, 1.0
        %v1607 = vadd.f32 %v1578, 1.0
        %v1608 = vadd.f32 %v1580, 1.0
        %v1609 = vadd.f32 %v1582, 1.0
        %v1610 = vadd.f32 %v1584, 1.0
        %v1611 = vadd.f32 %v1586, 1.0
        %v1612 = vadd.f32 %v1588, 1.0
        %v1613 = vadd.f32 %v1590, 1.0
        %v1614 = vadd.f32 %v1592, 1.0
        %v1615 = vadd.f32 %v1594, 1.0
        %v1616 = vadd.f32 %v1596, 1.0
        %v1617 = vadd.f32 %v1598, 1.0
        %v1618 = vadd.f32 %v1600, 1.0
        %v1619 = vadd.f32 %v1602, 1.0
        %v1620 = vadd.f32 %v1604, 1.0
        %v1621 = vrcp.pop %v1605
        %v1622 = vmul.f32 1.0, %v1621
        %v1623 = vrcp.pop %v1606
        %v1624 = vmul.f32 1.0, %v1623
        %v1625 = vrcp.pop %v1607
        %v1626 = vmul.f32 1.0, %v1625
        %v1627 = vrcp.pop %v1608
        %v1628 = vmul.f32 1.0, %v1627
        %v1629 = vrcp.pop %v1609
        %v1630 = vmul.f32 1.0, %v1629
        %v1631 = vrcp.pop %v1610
        %v1632 = vmul.f32 1.0, %v1631
        %v1633 = vrcp.pop %v1611
        %v1634 = vmul.f32 1.0, %v1633
        %v1635 = vrcp.pop %v1612
        %v1636 = vmul.f32 1.0, %v1635
        %v1637 = vrcp.pop %v1613
        %v1638 = vmul.f32 1.0, %v1637
        %v1639 = vrcp.pop %v1614
        %v1640 = vmul.f32 1.0, %v1639
        %v1641 = vrcp.pop %v1615
        %v1642 = vmul.f32 1.0, %v1641
        %v1643 = vrcp.pop %v1616
        %v1644 = vmul.f32 1.0, %v1643
        %v1645 = vrcp.pop %v1617
        %v1646 = vmul.f32 1.0, %v1645
        %v1647 = vrcp.pop %v1618
        %v1648 = vmul.f32 1.0, %v1647
        %v1649 = vrcp.pop %v1619
        %v1650 = vmul.f32 1.0, %v1649
        %v1651 = vrcp.pop %v1620
        %v1652 = vmul.f32 1.0, %v1651
        %v1653 = vmul.f32 %v1541, %v1622
        %v1654 = vmul.f32 %v1542, %v1624
        %v1655 = vmul.f32 %v1543, %v1626
        %v1656 = vmul.f32 %v1544, %v1628
        %v1657 = vmul.f32 %v1545, %v1630
        %v1658 = vmul.f32 %v1546, %v1632
        %v1659 = vmul.f32 %v1547, %v1634
        %v1660 = vmul.f32 %v1548, %v1636
        %v1661 = vmul.f32 %v1549, %v1638
        %v1662 = vmul.f32 %v1550, %v1640
        %v1663 = vmul.f32 %v1551, %v1642
        %v1664 = vmul.f32 %v1552, %v1644
        %v1665 = vmul.f32 %v1553, %v1646
        %v1666 = vmul.f32 %v1554, %v1648
        %v1667 = vmul.f32 %v1555, %v1650
        %v1668 = vmul.f32 %v1556, %v1652
        %vm1669 = vcmask 130048
        %1670 = vst.msk [vmem:[%s229] sm:$0xff] %vm1669, %v1653
        %1671 = vst.msk [vmem:[%s229 + $0x8] sm:$0xff] %vm1669, %v1654
        %1672 = vst.msk [vmem:[%s229 + $0x10] sm:$0xff] %vm1669, %v1655
        %1673 = vst.msk [vmem:[%s229 + $0x18] sm:$0xff] %vm1669, %v1656
        %1674 = vst.msk [vmem:[%s229 + $0x20] sm:$0xff] %vm1669, %v1657
        %1675 = vst.msk [vmem:[%s229 + $0x28] sm:$0xff] %vm1669, %v1658
        %1676 = vst.msk [vmem:[%s229 + $0x30] sm:$0xff] %vm1669, %v1659
        %1677 = vst.msk [vmem:[%s229 + $0x38] sm:$0xff] %vm1669, %v1660
        %1678 = vst.msk [vmem:[%s229 + $0x40] sm:$0xff] %vm1669, %v1661
        %1679 = vst.msk [vmem:[%s229 + $0x48] sm:$0xff] %vm1669, %v1662
        %1680 = vst.msk [vmem:[%s229 + $0x50] sm:$0xff] %vm1669, %v1663
        %1681 = vst.msk [vmem:[%s229 + $0x58] sm:$0xff] %vm1669, %v1664
        %1682 = vst.msk [vmem:[%s229 + $0x60] sm:$0xff] %vm1669, %v1665
        %1683 = vst.msk [vmem:[%s229 + $0x68] sm:$0xff] %vm1669, %v1666
        %1684 = vst.msk [vmem:[%s229 + $0x70] sm:$0xff] %vm1669, %v1667
        %1685 = vst.msk [vmem:[%s229 + $0x78] sm:$0xff] %vm1669, %v1668
        %s1686 = sand.u32 %s132, 1
        %s1687 = scalar_lea.sflag [#allocation5], %s1686
        %s1688 = sand.u32 %s132, 1
        %s1689 = smul.addr %s1688, 128
        %s1690 = scalar_lea.vmem [#allocation6], %s1689
        // Predicated region
        $region41: #{tpu_custom_call.1} parent=35 // pred_check
          %p1691 = pneg %p142
        $region42: #{tpu_custom_call.1} parent=35 // pred_check_branch
          %1693 = sbr.rel (%p1691) target = $region44
        $region43: #{tpu_custom_call.1} parent=35 // pred_region
          %s1694 = smul.u32 2, %s26
          %s1696 = ssub.s32 2048, 2048
          %1697 = vsyncadd %s1687, %s1696
          %s1698 = smul.addr %s25, 16
          %s1699 = sadd.s32 %s1694, %s1698
          %s1700 = smul.addr %s1699, 128
          %s1701 = scalar_lea.hbm %s4, %s1700
          %s1702 = sshll.u32 %s1690, 4
          %s1703 = int_to_ptr.vmem [resolvable:$true] %s1702
          %1708 = dma.vmem_to_hbm [thread:$0]  %s1703, 2048, %s1701, %s1687, 128, 128, 8
        $region44: #{tpu_custom_call.1} parent=35 // pred_fallthru
          _
      $region36: #{tpu_custom_call.1} parent=5 // pred_fallthru
        _
      %p1709 = scmp.le.s32.totalorder 2, %s16
      // Predicated region
      $region45: #{tpu_custom_call.1} parent=5 // pred_check
        %p1710 = pneg %p1709
      $region46: #{tpu_custom_call.1} parent=5 // pred_check_branch
        %1712 = sbr.rel (%p1710) target = $region48
      $region47: #{tpu_custom_call.1} parent=5 // pred_region
        %s1713 = ssub.s32 %s16, 2
        // Predicated region
        $region49: #{tpu_custom_call.1} parent=47 // pred_check
          %p1714 = pneg %p148
        $region50: #{tpu_custom_call.1} parent=47 // pred_check_branch
          %1716 = sbr.rel (%p1714) target = $region52
        $region51: #{tpu_custom_call.1} parent=47 // pred_region
          %s1717 = sand.u32 %s133, 1
          %s1718 = scalar_lea.sflag [#allocation5], %s1717
          %s1719 = sand.u32 %s133, 1
          %s1720 = smul.addr %s1719, 128
          %s1721 = scalar_lea.vmem [#allocation6], %s1720
          %1722 = dma.done %s1718, 2048
        $region52: #{tpu_custom_call.1} parent=47 // pred_fallthru
          _
      $region48: #{tpu_custom_call.1} parent=5 // pred_fallthru
        _
    $region6: #{tpu_custom_call.1} parent=1 // loop_footer
      %s20 = sadd.s32 1, %s16
    $region7: #{tpu_custom_call.1} parent=1 // loop_footer_branch
      %15 = sbr.rel target = $region3
    $region8: #{tpu_custom_call.1} parent=1 // loop_exit
      _
    %1723 = vsyncpa [#allocation4], 1
    %s1724 = scalar_lea.sflag [#allocation4], 1
    %1725 = vsyncpa %s1724, 1
    %1726 = vsyncpa [#allocation5], 1
    %s1727 = scalar_lea.sflag [#allocation5], 1
    %1728 = vsyncpa %s1727, 1

</llo_original>
